<compile_context>
chip_gen: v5e
topology: v5e:2x2
jax: 0.10.0
libtpu: 0.0.40
codegen_flags: <defaults>
</compile_context>

<pallas_src>
import math

import jax
import jax.numpy as jnp
from jax import lax
from jax.experimental import pallas as pl
from jax.experimental.pallas import tpu as pltpu

# Small, module-consistent sizes.
B, S, D, H, DFF = 2, 8, 32, 4, 64
DK = D // H
EPS = 1e-6  # LayerNorm eps of the Annotated-Transformer LayerNorm


def encoder_kernel(x_ref, bias_ref, wqkv_ref, wo_ref, w1_ref, w2_ref, vec_ref,
                   out_ref):
    x = x_ref[...]                                    # (B*S, D) f32

    # Packed small vectors: one vreg-sized (8, 128) slab.
    vec = vec_ref[...]
    bqkv = vec[0:1, 0:3 * D]
    bo = vec[1:2, 0:D]
    b1 = vec[2:3, 0:DFF]
    b2 = vec[3:4, 0:D]
    g1 = vec[4:5, 0:D]
    be1 = vec[5:6, 0:D]
    g2 = vec[6:7, 0:D]
    be2 = vec[7:8, 0:D]

    def layer_norm(v, g, b):
        # Annotated-Transformer LayerNorm: unbiased std (N-1), divide by (std+eps).
        # Single EUP rsqrt; matches g*(v-mean)/(sqrt(var)+eps) to ~1e-6 relative.
        mean = jnp.mean(v, axis=-1, keepdims=True)
        var = jnp.sum((v - mean) ** 2, axis=-1, keepdims=True) * (1.0 / (D - 1))
        inv = lax.rsqrt(var + EPS * EPS)
        return g * (v - mean) * inv + b

    # ---------- sublayer 0: x + self_attn(LayerNorm(x)) ----------
    xn = layer_norm(x, g1, be1)
    qkv = jnp.dot(xn.astype(jnp.bfloat16), wqkv_ref[...],
                  preferred_element_type=jnp.float32) + bqkv      # (B*S, 3D) f32

    def to_heads(t):  # (B*S, D) -> (B*H, S, DK), bf16 for the MXU
        return (t.reshape(B, S, H, DK).transpose(0, 2, 1, 3)
                 .reshape(B * H, S, DK).astype(jnp.bfloat16))

    qh = to_heads(qkv[:, 0:D])
    kh = to_heads(qkv[:, D:2 * D])
    vh = to_heads(qkv[:, 2 * D:3 * D])

    scale = 1.0 / math.sqrt(DK)
    # Batched QK^T over (B*H); mask bias is pre-broadcast over heads wrapper-side.
    scores = jnp.einsum('bqd,bkd->bqk', qh, kh,
                        preferred_element_type=jnp.float32) * scale + bias_ref[...]
    m = jnp.max(scores, axis=-1, keepdims=True)
    e = jnp.exp(scores - m)                                       # EUP
    p = e * pl.reciprocal(jnp.sum(e, axis=-1, keepdims=True), approx=True)  # EUP
    ctx = jnp.einsum('bqk,bkd->bqd', p.astype(jnp.bfloat16), vh,
                     preferred_element_type=jnp.float32)          # (B*H, S, DK)
    ctx = ctx.reshape(B, H, S, DK).transpose(0, 2, 1, 3).reshape(B * S, D)

    attn = jnp.dot(ctx.astype(jnp.bfloat16), wo_ref[...],
                   preferred_element_type=jnp.float32) + bo
    x1 = x + attn                                    # residual (dropout == identity)

    # ---------- sublayer 1: x + feed_forward(LayerNorm(x)) ----------
    xn2 = layer_norm(x1, g2, be2)
    h1 = jnp.maximum(
        jnp.dot(xn2.astype(jnp.bfloat16), w1_ref[...],
                preferred_element_type=jnp.float32) + b1, 0.0)
    ff = jnp.dot(h1.astype(jnp.bfloat16), w2_ref[...],
                 preferred_element_type=jnp.float32) + b2

    # NOTE: D=32 < 128 lanes -> masked partial stores; acceptable at 2 KB output.
    out_ref[...] = (x1 + ff).astype(out_ref.dtype)


def prepare_params(params):
    """One-time (outside the per-call path) fusion / packing / bf16 casting."""
    wq, bq, wk, bk, wv, bv, wo, bo, w1, b1, w2, b2, g1, be1, g2, be2 = params
    wqkv = jnp.concatenate([wq, wk, wv], axis=1).astype(jnp.bfloat16)   # (D, 3D)
    wo_b = wo.astype(jnp.bfloat16)
    w1_b = w1.astype(jnp.bfloat16)
    w2_b = w2.astype(jnp.bfloat16)
    # Pack the eight small row-vectors into a single (8, 128) f32 slab (one vreg,
    # one DMA).  f32 is kept here: these feed VPU adds/muls, not the MXU.
    bqkv = jnp.concatenate([bq, bk, bv], axis=1)                        # (1, 3D)
    vecs = jnp.zeros((8, 128), jnp.float32)
    vecs = vecs.at[0, :3 * D].set(bqkv[0])
    vecs = vecs.at[1, :D].set(bo[0])
    vecs = vecs.at[2, :DFF].set(b1[0])
    vecs = vecs.at[3, :D].set(b2[0])
    vecs = vecs.at[4, :D].set(g1[0])
    vecs = vecs.at[5, :D].set(be1[0])
    vecs = vecs.at[6, :D].set(g2[0])
    vecs = vecs.at[7, :D].set(be2[0])
    return (wqkv, wo_b, w1_b, w2_b, vecs)


def encoder_layer(x, mask, prepared):
    wqkv, wo, w1, w2, vecs = prepared

    # Row-flatten activations so all dense matmuls see B*S rows.
    x_flat = x.reshape(B * S, D)
    # Additive mask bias, pre-broadcast over heads: 0 keep, -1e9 masked.
    # (mask must be float {0,1}; cast defensively.)
    mask_bias = (mask.astype(jnp.float32) - 1.0) * 1e9               # (B, 1, S)
    mask_bias = jnp.broadcast_to(mask_bias, (B, H, S)).reshape(B * H, 1, S)

    # Everything fits trivially in VMEM (~40 KB total), so: no grid, no tiling,
    # all inputs untiled VMEM-resident.  Re-derive tiling + vmem_limit_bytes
    # against v7x's 64 MiB before scaling S/D/DFF.
    vmem = pl.BlockSpec(memory_space=pltpu.MemorySpace.VMEM)

    out_flat = pl.pallas_call(
        encoder_kernel,
        out_shape=jax.ShapeDtypeStruct((B * S, D), x.dtype),
        in_specs=[vmem] * 7,
        out_specs=vmem,
        compiler_params=pltpu.CompilerParams(vmem_limit_bytes=32 * 1024 * 1024),
    )(x_flat, mask_bias, wqkv, wo, w1, w2, vecs)
    return out_flat.reshape(B, S, D)


def reference(x, mask, params):
    """Pure-JAX reference replicating the PyTorch forward exactly."""
    wq, bq, wk, bk, wv, bv, wo, bo, w1, b1, w2, b2, g1, be1, g2, be2 = params

    def ln(v, g, b):
        mean = v.mean(-1, keepdims=True)
        var = ((v - mean) ** 2).sum(-1, keepdims=True) / (D - 1)
        return g * (v - mean) / (jnp.sqrt(var) + EPS) + b

    xn = ln(x, g1, be1)
    q = (xn @ wq + bq).reshape(B, S, H, DK).transpose(0, 2, 1, 3)
    k = (xn @ wk + bk).reshape(B, S, H, DK).transpose(0, 2, 1, 3)
    v = (xn @ wv + bv).reshape(B, S, H, DK).transpose(0, 2, 1, 3)
    scores = jnp.einsum('bhqd,bhkd->bhqk', q, k) / math.sqrt(DK)
    scores = jnp.where(mask[:, None, :, :] == 0.0, -1e9, scores)
    p = jax.nn.softmax(scores, axis=-1)
    ctx = jnp.einsum('bhqk,bhkd->bhqd', p, v).transpose(0, 2, 1, 3).reshape(B, S, D)
    x1 = x + (ctx @ wo + bo)
    xn2 = ln(x1, g2, be2)
    ff = jnp.maximum(xn2 @ w1 + b1, 0.0) @ w2 + b2
    return x1 + ff


def make_params(key):
    ks = jax.random.split(key, 6)
    scale = 0.02
    wq = scale * jax.random.normal(ks[0], (D, D), jnp.float32)
    wk = scale * jax.random.normal(ks[1], (D, D), jnp.float32)
    wv = scale * jax.random.normal(ks[2], (D, D), jnp.float32)
    wo = scale * jax.random.normal(ks[3], (D, D), jnp.float32)
    w1 = scale * jax.random.normal(ks[4], (D, DFF), jnp.float32)
    w2 = scale * jax.random.normal(ks[5], (DFF, D), jnp.float32)
    bq = jnp.full((1, D), 0.01, jnp.float32)
    bk = jnp.full((1, D), -0.01, jnp.float32)
    bv = jnp.full((1, D), 0.02, jnp.float32)
    bo = jnp.zeros((1, D), jnp.float32)
    b1 = jnp.full((1, DFF), 0.03, jnp.float32)
    b2 = jnp.zeros((1, D), jnp.float32)
    g1 = jnp.ones((1, D), jnp.float32)
    be1 = jnp.zeros((1, D), jnp.float32)
    g2 = jnp.ones((1, D), jnp.float32)
    be2 = jnp.zeros((1, D), jnp.float32)
    return (wq, bq, wk, bk, wv, bv, wo, bo, w1, b1, w2, b2, g1, be1, g2, be2)


if __name__ == "__main__":
    key = jax.random.PRNGKey(0)
    k_x, k_p = jax.random.split(key)
    x = jax.random.normal(k_x, (B, S, D), jnp.float32)
    # src mask: keep everything for batch 0; mask out the last two key positions
    # for batch 1 (exercises the masked_fill path).
    mask = jnp.ones((B, 1, S), jnp.float32)
    mask = mask.at[1, 0, S - 2:].set(0.0)

    params = make_params(k_p)
    prepared = prepare_params(params)      # one-time fusion / packing / bf16 cast

    out = encoder_layer(x, mask, prepared)
    out = jax.block_until_ready(out)

    ref = reference(x, mask, params)
    assert out.shape == (B, S, D) and out.dtype == jnp.float32
    assert jnp.allclose(out, ref, rtol=2e-3, atol=2e-3), "mismatch vs pure-JAX reference"

    # TODO(synk): dropout is identity (eval / p=0); training-mode dropout would
    # need pltpu.prng_seed / pltpu.prng_random_bits.
    print("KERNEL_OK")
</pallas_src>

<mosaic_0001>
module attributes {stable_mosaic.version = 11 : i64} {
  func.func @encoder_kernel(%arg0: memref<16x32xf32, #tpu.memory_space<vmem>>, %arg1: memref<8x1x8xf32, #tpu.memory_space<vmem>>, %arg2: memref<32x96xbf16, #tpu.memory_space<vmem>>, %arg3: memref<32x32xbf16, #tpu.memory_space<vmem>>, %arg4: memref<32x64xbf16, #tpu.memory_space<vmem>>, %arg5: memref<64x32xbf16, #tpu.memory_space<vmem>>, %arg6: memref<8x128xf32, #tpu.memory_space<vmem>>, %arg7: memref<16x32xf32, #tpu.memory_space<vmem>>) attributes {dimension_semantics = [], scalar_prefetch = 0 : i64, scratch_operands = 0 : i64, tpu.core_type = #tpu.core_type<tc>} {
    %c0 = arith.constant 0 : index
    %c0_0 = arith.constant 0 : index
    %0 = vector.load %arg0[%c0, %c0_0] : memref<16x32xf32, #tpu.memory_space<vmem>>, vector<16x32xf32>
    %c0_1 = arith.constant 0 : index
    %c0_2 = arith.constant 0 : index
    %1 = vector.load %arg6[%c0_1, %c0_2] : memref<8x128xf32, #tpu.memory_space<vmem>>, vector<8x128xf32>
    %2 = vector.extract_strided_slice %1 {offsets = [0, 0], sizes = [1, 96], strides = [1, 1]} : vector<8x128xf32> to vector<1x96xf32>
    %3 = vector.extract_strided_slice %1 {offsets = [1, 0], sizes = [1, 32], strides = [1, 1]} : vector<8x128xf32> to vector<1x32xf32>
    %4 = vector.extract_strided_slice %1 {offsets = [2, 0], sizes = [1, 64], strides = [1, 1]} : vector<8x128xf32> to vector<1x64xf32>
    %5 = vector.extract_strided_slice %1 {offsets = [3, 0], sizes = [1, 32], strides = [1, 1]} : vector<8x128xf32> to vector<1x32xf32>
    %6 = vector.extract_strided_slice %1 {offsets = [4, 0], sizes = [1, 32], strides = [1, 1]} : vector<8x128xf32> to vector<1x32xf32>
    %7 = vector.extract_strided_slice %1 {offsets = [5, 0], sizes = [1, 32], strides = [1, 1]} : vector<8x128xf32> to vector<1x32xf32>
    %8 = vector.extract_strided_slice %1 {offsets = [6, 0], sizes = [1, 32], strides = [1, 1]} : vector<8x128xf32> to vector<1x32xf32>
    %9 = vector.extract_strided_slice %1 {offsets = [7, 0], sizes = [1, 32], strides = [1, 1]} : vector<8x128xf32> to vector<1x32xf32>
    %cst = arith.constant dense<0.000000e+00> : vector<16xf32>
    %10 = vector.multi_reduction <add>, %0, %cst [1] : vector<16x32xf32> to vector<16xf32>
    %11 = vector.shape_cast %10 : vector<16xf32> to vector<16x1xf32>
    %cst_3 = arith.constant 3.200000e+01 : f32
    %12 = vector.broadcast %cst_3 : f32 to vector<16x1xf32>
    %13 = arith.divf %11, %12 : vector<16x1xf32>
    %14 = vector.broadcast %13 : vector<16x1xf32> to vector<16x32xf32>
    %15 = arith.subf %0, %14 : vector<16x32xf32>
    %16 = arith.mulf %15, %15 : vector<16x32xf32>
    %cst_4 = arith.constant dense<0.000000e+00> : vector<16xf32>
    %17 = vector.multi_reduction <add>, %16, %cst_4 [1] : vector<16x32xf32> to vector<16xf32>
    %18 = vector.shape_cast %17 : vector<16xf32> to vector<16x1xf32>
    %cst_5 = arith.constant 0.0322580636 : f32
    %19 = vector.broadcast %cst_5 : f32 to vector<16x1xf32>
    %20 = arith.mulf %18, %19 : vector<16x1xf32>
    %cst_6 = arith.constant 9.99999996E-13 : f32
    %21 = vector.broadcast %cst_6 : f32 to vector<16x1xf32>
    %22 = arith.addf %20, %21 : vector<16x1xf32>
    %23 = math.rsqrt %22 : vector<16x1xf32>
    %24 = vector.broadcast %13 : vector<16x1xf32> to vector<16x32xf32>
    %25 = arith.subf %0, %24 : vector<16x32xf32>
    %26 = vector.broadcast %6 : vector<1x32xf32> to vector<16x32xf32>
    %27 = arith.mulf %26, %25 : vector<16x32xf32>
    %28 = vector.broadcast %23 : vector<16x1xf32> to vector<16x32xf32>
    %29 = arith.mulf %27, %28 : vector<16x32xf32>
    %30 = vector.broadcast %7 : vector<1x32xf32> to vector<16x32xf32>
    %31 = arith.addf %29, %30 : vector<16x32xf32>
    %32 = arith.truncf %31 : vector<16x32xf32> to vector<16x32xbf16>
    %c0_7 = arith.constant 0 : index
    %c0_8 = arith.constant 0 : index
    %33 = vector.load %arg2[%c0_7, %c0_8] : memref<32x96xbf16, #tpu.memory_space<vmem>>, vector<32x96xbf16>
    %cst_9 = arith.constant dense<0.000000e+00> : vector<16x96xf32>
    %34 = tpu.matmul %32, %33, %cst_9 {dimension_numbers = #tpu.dot_dimension_numbers<[1], [0], [0], [1], [0, 0, 1, 1], [], []>} : vector<16x32xbf16>, vector<32x96xbf16>, vector<16x96xf32> -> vector<16x96xf32>
    %35 = vector.broadcast %2 : vector<1x96xf32> to vector<16x96xf32>
    %36 = arith.addf %34, %35 : vector<16x96xf32>
    %37 = vector.extract_strided_slice %36 {offsets = [0, 0], sizes = [16, 32], strides = [1, 1]} : vector<16x96xf32> to vector<16x32xf32>
    %38 = vector.shape_cast %37 : vector<16x32xf32> to vector<2x8x4x8xf32>
    %39 = tpu.transpose %38, [0, 2, 1, 3] : vector<2x8x4x8xf32> -> vector<2x4x8x8xf32>
    %40 = vector.shape_cast %39 : vector<2x4x8x8xf32> to vector<8x8x8xf32>
    %41 = arith.truncf %40 : vector<8x8x8xf32> to vector<8x8x8xbf16>
    %42 = vector.extract_strided_slice %36 {offsets = [0, 32], sizes = [16, 32], strides = [1, 1]} : vector<16x96xf32> to vector<16x32xf32>
    %43 = vector.shape_cast %42 : vector<16x32xf32> to vector<2x8x4x8xf32>
    %44 = tpu.transpose %43, [0, 2, 1, 3] : vector<2x8x4x8xf32> -> vector<2x4x8x8xf32>
    %45 = vector.shape_cast %44 : vector<2x4x8x8xf32> to vector<8x8x8xf32>
    %46 = arith.truncf %45 : vector<8x8x8xf32> to vector<8x8x8xbf16>
    %47 = vector.extract_strided_slice %36 {offsets = [0, 64], sizes = [16, 32], strides = [1, 1]} : vector<16x96xf32> to vector<16x32xf32>
    %48 = vector.shape_cast %47 : vector<16x32xf32> to vector<2x8x4x8xf32>
    %49 = tpu.transpose %48, [0, 2, 1, 3] : vector<2x8x4x8xf32> -> vector<2x4x8x8xf32>
    %50 = vector.shape_cast %49 : vector<2x4x8x8xf32> to vector<8x8x8xf32>
    %51 = arith.truncf %50 : vector<8x8x8xf32> to vector<8x8x8xbf16>
    "tpu.trace_start"() <{level = 10 : i32, message = "bqd,bkd->bqk"}> : () -> ()
    %cst_10 = arith.constant dense<0.000000e+00> : vector<8x8x8xf32>
    %52 = tpu.matmul %41, %46, %cst_10 {dimension_numbers = #tpu.dot_dimension_numbers<[2], [2], [1], [1], [0, 0, 0, 1, 1, 1], [0], [0]>} : vector<8x8x8xbf16>, vector<8x8x8xbf16>, vector<8x8x8xf32> -> vector<8x8x8xf32>
    "tpu.trace_stop"() : () -> ()
    %cst_11 = arith.constant 0.353553385 : f32
    %53 = vector.broadcast %cst_11 : f32 to vector<8x8x8xf32>
    %54 = arith.mulf %52, %53 : vector<8x8x8xf32>
    %c0_12 = arith.constant 0 : index
    %c0_13 = arith.constant 0 : index
    %c0_14 = arith.constant 0 : index
    %55 = vector.load %arg1[%c0_12, %c0_13, %c0_14] : memref<8x1x8xf32, #tpu.memory_space<vmem>>, vector<8x1x8xf32>
    %56 = vector.broadcast %55 : vector<8x1x8xf32> to vector<8x8x8xf32>
    %57 = arith.addf %54, %56 : vector<8x8x8xf32>
    %cst_15 = arith.constant dense<0xFF800000> : vector<8x8xf32>
    %58 = vector.multi_reduction <maximumf>, %57, %cst_15 [2] : vector<8x8x8xf32> to vector<8x8xf32>
    %59 = vector.shape_cast %58 : vector<8x8xf32> to vector<8x8x1xf32>
    %60 = vector.broadcast %59 : vector<8x8x1xf32> to vector<8x8x8xf32>
    %61 = arith.subf %57, %60 : vector<8x8x8xf32>
    %62 = math.exp %61 : vector<8x8x8xf32>
    %cst_16 = arith.constant dense<0.000000e+00> : vector<8x8xf32>
    %63 = vector.multi_reduction <add>, %62, %cst_16 [2] : vector<8x8x8xf32> to vector<8x8xf32>
    %64 = vector.shape_cast %63 : vector<8x8xf32> to vector<8x8x1xf32>
    %65 = tpu.reciprocal %64 {approx = true} : vector<8x8x1xf32> -> vector<8x8x1xf32>
    %66 = vector.broadcast %65 : vector<8x8x1xf32> to vector<8x8x8xf32>
    %67 = arith.mulf %62, %66 : vector<8x8x8xf32>
    %68 = arith.truncf %67 : vector<8x8x8xf32> to vector<8x8x8xbf16>
    "tpu.trace_start"() <{level = 10 : i32, message = "bqk,bkd->bqd"}> : () -> ()
    %cst_17 = arith.constant dense<0.000000e+00> : vector<8x8x8xf32>
    %69 = tpu.matmul %68, %51, %cst_17 {dimension_numbers = #tpu.dot_dimension_numbers<[2], [1], [1], [2], [0, 0, 0, 1, 1, 2], [0], [0]>} : vector<8x8x8xbf16>, vector<8x8x8xbf16>, vector<8x8x8xf32> -> vector<8x8x8xf32>
    "tpu.trace_stop"() : () -> ()
    %70 = vector.shape_cast %69 : vector<8x8x8xf32> to vector<2x4x8x8xf32>
    %71 = tpu.transpose %70, [0, 2, 1, 3] : vector<2x4x8x8xf32> -> vector<2x8x4x8xf32>
    %72 = vector.shape_cast %71 : vector<2x8x4x8xf32> to vector<16x32xf32>
    %73 = arith.truncf %72 : vector<16x32xf32> to vector<16x32xbf16>
    %c0_18 = arith.constant 0 : index
    %c0_19 = arith.constant 0 : index
    %74 = vector.load %arg3[%c0_18, %c0_19] : memref<32x32xbf16, #tpu.memory_space<vmem>>, vector<32x32xbf16>
    %cst_20 = arith.constant dense<0.000000e+00> : vector<16x32xf32>
    %75 = tpu.matmul %73, %74, %cst_20 {dimension_numbers = #tpu.dot_dimension_numbers<[1], [0], [0], [1], [0, 0, 1, 1], [], []>} : vector<16x32xbf16>, vector<32x32xbf16>, vector<16x32xf32> -> vector<16x32xf32>
    %76 = vector.broadcast %3 : vector<1x32xf32> to vector<16x32xf32>
    %77 = arith.addf %75, %76 : vector<16x32xf32>
    %78 = arith.addf %0, %77 : vector<16x32xf32>
    %cst_21 = arith.constant dense<0.000000e+00> : vector<16xf32>
    %79 = vector.multi_reduction <add>, %78, %cst_21 [1] : vector<16x32xf32> to vector<16xf32>
    %80 = vector.shape_cast %79 : vector<16xf32> to vector<16x1xf32>
    %cst_22 = arith.constant 3.200000e+01 : f32
    %81 = vector.broadcast %cst_22 : f32 to vector<16x1xf32>
    %82 = arith.divf %80, %81 : vector<16x1xf32>
    %83 = vector.broadcast %82 : vector<16x1xf32> to vector<16x32xf32>
    %84 = arith.subf %78, %83 : vector<16x32xf32>
    %85 = arith.mulf %84, %84 : vector<16x32xf32>
    %cst_23 = arith.constant dense<0.000000e+00> : vector<16xf32>
    %86 = vector.multi_reduction <add>, %85, %cst_23 [1] : vector<16x32xf32> to vector<16xf32>
    %87 = vector.shape_cast %86 : vector<16xf32> to vector<16x1xf32>
    %cst_24 = arith.constant 0.0322580636 : f32
    %88 = vector.broadcast %cst_24 : f32 to vector<16x1xf32>
    %89 = arith.mulf %87, %88 : vector<16x1xf32>
    %cst_25 = arith.constant 9.99999996E-13 : f32
    %90 = vector.broadcast %cst_25 : f32 to vector<16x1xf32>
    %91 = arith.addf %89, %90 : vector<16x1xf32>
    %92 = math.rsqrt %91 : vector<16x1xf32>
    %93 = vector.broadcast %82 : vector<16x1xf32> to vector<16x32xf32>
    %94 = arith.subf %78, %93 : vector<16x32xf32>
    %95 = vector.broadcast %8 : vector<1x32xf32> to vector<16x32xf32>
    %96 = arith.mulf %95, %94 : vector<16x32xf32>
    %97 = vector.broadcast %92 : vector<16x1xf32> to vector<16x32xf32>
    %98 = arith.mulf %96, %97 : vector<16x32xf32>
    %99 = vector.broadcast %9 : vector<1x32xf32> to vector<16x32xf32>
    %100 = arith.addf %98, %99 : vector<16x32xf32>
    %101 = arith.truncf %100 : vector<16x32xf32> to vector<16x32xbf16>
    %c0_26 = arith.constant 0 : index
    %c0_27 = arith.constant 0 : index
    %102 = vector.load %arg4[%c0_26, %c0_27] : memref<32x64xbf16, #tpu.memory_space<vmem>>, vector<32x64xbf16>
    %cst_28 = arith.constant dense<0.000000e+00> : vector<16x64xf32>
    %103 = tpu.matmul %101, %102, %cst_28 {dimension_numbers = #tpu.dot_dimension_numbers<[1], [0], [0], [1], [0, 0, 1, 1], [], []>} : vector<16x32xbf16>, vector<32x64xbf16>, vector<16x64xf32> -> vector<16x64xf32>
    %104 = vector.broadcast %4 : vector<1x64xf32> to vector<16x64xf32>
    %105 = arith.addf %103, %104 : vector<16x64xf32>
    %cst_29 = arith.constant 0.000000e+00 : f32
    %106 = vector.broadcast %cst_29 : f32 to vector<16x64xf32>
    %107 = arith.maximumf %105, %106 : vector<16x64xf32>
    %108 = arith.truncf %107 : vector<16x64xf32> to vector<16x64xbf16>
    %c0_30 = arith.constant 0 : index
    %c0_31 = arith.constant 0 : index
    %109 = vector.load %arg5[%c0_30, %c0_31] : memref<64x32xbf16, #tpu.memory_space<vmem>>, vector<64x32xbf16>
    %cst_32 = arith.constant dense<0.000000e+00> : vector<16x32xf32>
    %110 = tpu.matmul %108, %109, %cst_32 {dimension_numbers = #tpu.dot_dimension_numbers<[1], [0], [0], [1], [0, 0, 1, 1], [], []>} : vector<16x64xbf16>, vector<64x32xbf16>, vector<16x32xf32> -> vector<16x32xf32>
    %111 = vector.broadcast %5 : vector<1x32xf32> to vector<16x32xf32>
    %112 = arith.addf %110, %111 : vector<16x32xf32>
    %113 = arith.addf %78, %112 : vector<16x32xf32>
    %c0_33 = arith.constant 0 : index
    %c0_34 = arith.constant 0 : index
    %114 = vector.load %arg7[%c0_33, %c0_34] : memref<16x32xf32, #tpu.memory_space<vmem>>, vector<16x32xf32>
    tpu.vector_store %arg7[%c0_33, %c0_34], %113 {strides = array<i32>} : memref<16x32xf32, #tpu.memory_space<vmem>>, vector<16x32xf32>,
    return
  }
}

</mosaic_0001>

<llo_original>
// kernel: tpu_custom_call.1
$region0: #{tpu_custom_call.1}
  #allocation0 [shape = 'u32[]', space=smem, size = 0x4, offset = 0x4, fixed_abs, tag = 'smem constant byte address 0x4 - core index']
  #allocation1 [shape = 'u32[72,128]{1,0:T(1,128)}', space=vmem, size = 0x9000, scoped, tag = 'internal scratch']
  %s0 = inlined_call_operand.vmem [shape: f32[16,32], index: 0, kind: input, shape index: {}]
  %s1 = inlined_call_operand.hbm [shape: f32[8,1,8], index: 1, kind: input, shape index: {}]
  %s2 = inlined_call_operand.vmem [shape: bf16[32,96], index: 2, kind: input, shape index: {}]
  %s3 = inlined_call_operand.vmem [shape: bf16[32,32], index: 3, kind: input, shape index: {}]
  %s4 = inlined_call_operand.hbm [shape: bf16[32,64], index: 4, kind: input, shape index: {}]
  %s5 = inlined_call_operand.vmem [shape: bf16[64,32], index: 5, kind: input, shape index: {}]
  %s6 = inlined_call_operand.hbm [shape: f32[8,128], index: 6, kind: input, shape index: {}]
  %s7 = inlined_call_operand.hbm [shape: f32[16,32], index: 7, kind: output, shape index: {}]
  %s8 = sld [smem:[#allocation0]]
  $region50: #{tpu_custom_call.1} parent=0
    _
  %s10 = ssub.s32 1, %s8
  %s11 = scalar_select 0, %s10, %s8
  $region1: #{tpu_custom_call.1} parent=0
    #allocation2 [shape = 'u8[4096]{0}', space=vmem, size = 0x1000, scoped, tag = 'input window, operand 1, single buffered']
    #allocation3 [shape = 's32[1]{0}', space=sflag, size = 0x4, scoped, tag = 'scoped memory for tpu_custom_call.1']
    #allocation4 [shape = 's32[1]{0}', space=sflag, size = 0x4, scoped, tag = 'scoped memory for tpu_custom_call.1']
    #allocation5 [shape = 'u8[8192]{0}', space=vmem, size = 0x2000, scoped, tag = 'input window, operand 4, single buffered']
    #allocation6 [shape = 's32[1]{0}', space=sflag, size = 0x4, scoped, tag = 'scoped memory for tpu_custom_call.1']
    #allocation7 [shape = 'u8[4096]{0}', space=vmem, size = 0x1000, scoped, tag = 'input window, operand 6, single buffered']
    #allocation8 [shape = 'u8[8192]{0}', space=vmem, size = 0x2000, scoped, tag = 'output window, operand 0, single buffered']
    %12 = vsyncpa [#allocation3], 0
    %13 = vsyncpa [#allocation6], 0
    %14 = vsyncpa [#allocation4], 0
    // Predicated region
    $region2: #{tpu_custom_call.1} parent=1 // pred_check
      _
    $region3: #{tpu_custom_call.1} parent=1 // pred_check_branch
      %16 = sbr.rel (0) target = $region5
    $region4: #{tpu_custom_call.1} parent=1 // pred_region
      _
    $region5: #{tpu_custom_call.1} parent=1 // pred_fallthru
      _
    // Predicated region
    $region6: #{tpu_custom_call.1} parent=1 // pred_check
      _
    $region7: #{tpu_custom_call.1} parent=1 // pred_check_branch
      %18 = sbr.rel (0) target = $region9
    $region8: #{tpu_custom_call.1} parent=1 // pred_region
      %20 = vsyncadd [#allocation3], 0
      %s21 = sshll.u32 %s1, 4
      %s22 = int_to_ptr.hbm [resolvable:$true] %s21
      %s23 = sshll.u32 [#allocation2], 4
      %s24 = int_to_ptr.vmem [resolvable:$true] %s23
      %29 = dma.hbm_to_vmem [thread:$0]  %s22, 128, %s24, [#allocation3], 16, 16, 1
    $region9: #{tpu_custom_call.1} parent=1 // pred_fallthru
      _
    // Predicated region
    $region10: #{tpu_custom_call.1} parent=1 // pred_check
      _
    $region11: #{tpu_custom_call.1} parent=1 // pred_check_branch
      %31 = sbr.rel (0) target = $region13
    $region12: #{tpu_custom_call.1} parent=1 // pred_region
      _
    $region13: #{tpu_custom_call.1} parent=1 // pred_fallthru
      _
    // Predicated region
    $region14: #{tpu_custom_call.1} parent=1 // pred_check
      _
    $region15: #{tpu_custom_call.1} parent=1 // pred_check_branch
      %33 = sbr.rel (0) target = $region17
    $region16: #{tpu_custom_call.1} parent=1 // pred_region
      _
    $region17: #{tpu_custom_call.1} parent=1 // pred_fallthru
      _
    // Predicated region
    $region18: #{tpu_custom_call.1} parent=1 // pred_check
      _
    $region19: #{tpu_custom_call.1} parent=1 // pred_check_branch
      %35 = sbr.rel (0) target = $region21
    $region20: #{tpu_custom_call.1} parent=1 // pred_region
      %37 = vsyncadd [#allocation6], 0
      %s38 = sshll.u32 %s4, 4
      %s39 = int_to_ptr.hbm [resolvable:$true] %s38
      %s40 = sshll.u32 [#allocation5], 4
      %s41 = int_to_ptr.vmem [resolvable:$true] %s40
      %46 = dma.hbm_to_vmem [thread:$0]  %s39, 256, %s41, [#allocation6], 64, 64, 4
    $region21: #{tpu_custom_call.1} parent=1 // pred_fallthru
      _
    // Predicated region
    $region22: #{tpu_custom_call.1} parent=1 // pred_check
      _
    $region23: #{tpu_custom_call.1} parent=1 // pred_check_branch
      %48 = sbr.rel (0) target = $region25
    $region24: #{tpu_custom_call.1} parent=1 // pred_region
      _
    $region25: #{tpu_custom_call.1} parent=1 // pred_fallthru
      _
    // Predicated region
    $region26: #{tpu_custom_call.1} parent=1 // pred_check
      _
    $region27: #{tpu_custom_call.1} parent=1 // pred_check_branch
      %50 = sbr.rel (0) target = $region29
    $region28: #{tpu_custom_call.1} parent=1 // pred_region
      %52 = vsyncadd [#allocation6], 0
      %s54 = sshll.u32 %s6, 4
      %s55 = int_to_ptr.hbm [resolvable:$true] %s54
      %s56 = sshll.u32 [#allocation7], 4
      %s57 = int_to_ptr.vmem [resolvable:$true] %s56
      %59 = dma.hbm_to_vmem [thread:$0]  %s55, 128, %s57, [#allocation6]
    $region29: #{tpu_custom_call.1} parent=1 // pred_fallthru
      _
    // Predicated region
    $region30: #{tpu_custom_call.1} parent=1 // pred_check
      _
    $region31: #{tpu_custom_call.1} parent=1 // pred_check_branch
      %61 = sbr.rel (0) target = $region33
    $region32: #{tpu_custom_call.1} parent=1 // pred_region
      %63 = dma.done [#allocation3], 128
    $region33: #{tpu_custom_call.1} parent=1 // pred_fallthru
      _
    // Predicated region
    $region34: #{tpu_custom_call.1} parent=1 // pred_check
      _
    $region35: #{tpu_custom_call.1} parent=1 // pred_check_branch
      %65 = sbr.rel (0) target = $region37
    $region36: #{tpu_custom_call.1} parent=1 // pred_region
      %67 = dma.done [#allocation6], 256
    $region37: #{tpu_custom_call.1} parent=1 // pred_fallthru
      _
    // Predicated region
    $region38: #{tpu_custom_call.1} parent=1 // pred_check
      _
    $region39: #{tpu_custom_call.1} parent=1 // pred_check_branch
      %69 = sbr.rel (0) target = $region41
    $region40: #{tpu_custom_call.1} parent=1 // pred_region
      %71 = dma.done [#allocation6], 128
    $region41: #{tpu_custom_call.1} parent=1 // pred_fallthru
      _
    %v73 = vld [vmem:[%s0] sm:$0xff]
    %v74 = vld [vmem:[%s0 + $0x8] sm:$0xff]
    %v75 = vld [vmem:[#allocation7] sm:$0xff]
    %vm76 = vcmask 261120
    %v77 = vsel %vm76, %v73, 0.0
    %78 = vadd.xlane.f32.xlu0 %v77
    %v79 = vpop.xlane.xlu0 %78
    %v80 = vsel %vm76, %v74, 0.0
    %81 = vadd.xlane.f32.xlu0 %v80
    %v82 = vpop.xlane.xlu0 %81
    %v83 = vrcp.pop 32.0
    %v84 = vmul.f32 32.0, %v83
    %v85 = vsub.f32 1.0, %v84
    %v86 = vmul.f32 %v83, %v85
    %v87 = vadd.f32 %v83, %v86
    %vm88 = vweird.f32 %v83
    %v89 = vsel %vm88, %v83, %v87
    %v90 = vmul.f32 %v79, %v89
    %v91 = vmul.f32 %v82, %v89
    %v92 = vsub.f32 %v73, %v90
    %v93 = vsub.f32 %v74, %v91
    %v94 = vmul.f32 %v92, %v92
    %v95 = vmul.f32 %v93, %v93
    %v96 = vsel %vm76, %v94, 0.0
    %97 = vadd.xlane.f32.xlu0 %v96
    %v98 = vpop.xlane.xlu0 %97
    %v99 = vsel %vm76, %v95, 0.0
    %100 = vadd.xlane.f32.xlu0 %v99
    %v101 = vpop.xlane.xlu0 %100
    %v102 = vmul.f32 %v98, 0.032258064
    %v103 = vmul.f32 %v101, 0.032258064
    %v104 = vadd.f32 %v102, 1e-12
    %v105 = vadd.f32 %v103, 1e-12
    %v106 = vrsqrt.pop %v104
    %v107 = vmul.f32 %v106, %v104
    %v108 = vmul.f32 %v107, %v106
    %v109 = vmul.f32 0.5, %v108
    %v110 = vsub.f32 1.5, %v109
    %v111 = vmul.f32 %v106, %v110
    %vm112 = vweird.f32 %v104
    %vm113 = vweird.f32 %v106
    %vm114 = vmor %vm112, %vm113
    %v115 = vsel %vm114, %v106, %v111
    %v116 = vrsqrt.pop %v105
    %v117 = vmul.f32 %v116, %v105
    %v118 = vmul.f32 %v117, %v116
    %v119 = vmul.f32 0.5, %v118
    %v120 = vsub.f32 1.5, %v119
    %v121 = vmul.f32 %v116, %v120
    %vm122 = vweird.f32 %v105
    %vm123 = vweird.f32 %v116
    %vm124 = vmor %vm122, %vm123
    %v125 = vsel %vm124, %v116, %v121
    %v126 = vperm.slane %v75, 4
    %v127 = vmul.f32 %v126, %v92
    %v128 = vmul.f32 %v126, %v93
    %v129 = vmul.f32 %v127, %v115
    %v130 = vmul.f32 %v128, %v125
    %v131 = vperm.slane %v75, 5
    %v132 = vadd.f32 %v129, %v131
    %v133 = vadd.f32 %v130, %v131
    %v134 = vpack.c.bf16 %v133, %v132
    %v135 = vld [vmem:[%s2] sm:$0xf]
    %v136 = vld [vmem:[%s2 + $0x4] sm:$0xf]
    %v137 = vld [vmem:[%s2 + $0x8] sm:$0xf]
    %v138 = vld [vmem:[%s2 + $0xc] sm:$0xf]
    %v139 = vperm.slane %v75, 0
    %v144 = vunpack.c.l.b16 %v135
    %v145 = vunpack.c.l.b16 %v136
    %v146 = vunpack.c.l.b16 %v137
    %v147 = vunpack.c.l.b16 %v138
    %v148 = vpack.c.b16 %v145, %v144
    %v149 = vpack.c.b16 %v147, %v146
    %v153 = vsel %vm76, %v134, 0
    %155 = vmatpush.bf16.msra.mxu0 0
    %156 = vmatpush.bf16.msra.mxu0 0
    %157 = vmatpush.bf16.msra.mxu0 0
    %158 = vmatpush.bf16.msra.mxu0 0
    %159 = vmatpush.bf16.msra.mxu0 0
    %160 = vmatpush.bf16.msra.mxu0 0
    %161 = vmatpush.bf16.msra.mxu0 %v149
    %162 = vmatpush.bf16.msra.mxu0 %v148
    %163 = vmatmul.bf16.gmra.mxu0 %v153
    %v164 = vpop.f32.mrf.mxu0
    %v165 = vadd.f32 %v139, %v164
    %v166 = vpop.f32.mrf.mxu0
    %v167 = vadd.f32 %v139, %v166
    %168 = vdwg.mxu0
    %171 = vrot.lane.b32.xlu0 %v165, 120
    %v172 = vpop.permute.xlu0 %171
    %173 = vrot.lane.b32.xlu0 %v167, 120
    %v174 = vpop.permute.xlu0 %173
    %177 = vrot.lane.b32.xlu0 %v165, 112
    %v178 = vpop.permute.xlu0 %177
    %179 = vrot.lane.b32.xlu0 %v167, 112
    %v180 = vpop.permute.xlu0 %179
    %183 = vrot.lane.b32.xlu0 %v165, 104
    %v184 = vpop.permute.xlu0 %183
    %185 = vrot.lane.b32.xlu0 %v167, 104
    %v186 = vpop.permute.xlu0 %185
    %v189 = vrot.slane %v178, 4
    %vm190 = vcmask 1047556
    %v191 = vsel %vm190, %v189, %v165
    %v192 = vrot.slane %v165, 4
    %v193 = vsel %vm190, %v178, %v192
    %v195 = vunpack.c.l.s4 1983009808
    %v196 = vunpack.c.0.s8 %v195
    %v197 = vperm.slane %v191, %v196
    %v199 = vunpack.c.l.s4 1983009808
    %v200 = vunpack.c.0.s8 %v199
    %v201 = vperm.slane %v193, %v200
    %v202 = vrot.slane %v184, 4
    %v203 = vsel %vm190, %v202, %v172
    %v204 = vrot.slane %v172, 4
    %v205 = vsel %vm190, %v184, %v204
    %v207 = vunpack.c.l.s4 1983009808
    %v208 = vunpack.c.0.s8 %v207
    %v209 = vperm.slane %v203, %v208
    %v211 = vunpack.c.l.s4 1983009808
    %v212 = vunpack.c.0.s8 %v211
    %v213 = vperm.slane %v205, %v212
    %v214 = vrot.slane %v209, 4
    %v215 = vsel %vm190, %v214, %v197
    %v216 = vrot.slane %v197, 4
    %v217 = vsel %vm190, %v209, %v216
    %v219 = vunpack.c.l.s4 1934713408
    %v220 = vunpack.c.0.s8 %v219
    %v221 = vperm.slane %v215, %v220
    %v223 = vunpack.c.l.s4 1934713408
    %v224 = vunpack.c.0.s8 %v223
    %v225 = vperm.slane %v217, %v224
    %v226 = vrot.slane %v213, 4
    %v227 = vsel %vm190, %v226, %v201
    %v228 = vrot.slane %v201, 4
    %v229 = vsel %vm190, %v213, %v228
    %v231 = vunpack.c.l.s4 1934713408
    %v232 = vunpack.c.0.s8 %v231
    %v233 = vperm.slane %v227, %v232
    %v235 = vunpack.c.l.s4 1934713408
    %v236 = vunpack.c.0.s8 %v235
    %v237 = vperm.slane %v229, %v236
    %v238 = vrot.slane %v221, 4
    %v239 = vsel %vm190, 0.0, %v238
    %v240 = vrot.slane %v225, 4
    %v241 = vsel %vm190, 0.0, %v240
    %v242 = vrot.slane %v233, 4
    %v243 = vsel %vm190, 0.0, %v242
    %v244 = vrot.slane %v237, 4
    %v245 = vsel %vm190, 0.0, %v244
    %v246 = vrot.slane %v180, 4
    %v247 = vsel %vm190, %v246, %v167
    %v248 = vrot.slane %v167, 4
    %v249 = vsel %vm190, %v180, %v248
    %v251 = vunpack.c.l.s4 1983009808
    %v252 = vunpack.c.0.s8 %v251
    %v253 = vperm.slane %v247, %v252
    %v255 = vunpack.c.l.s4 1983009808
    %v256 = vunpack.c.0.s8 %v255
    %v257 = vperm.slane %v249, %v256
    %v258 = vrot.slane %v186, 4
    %v259 = vsel %vm190, %v258, %v174
    %v260 = vrot.slane %v174, 4
    %v261 = vsel %vm190, %v186, %v260
    %v263 = vunpack.c.l.s4 1983009808
    %v264 = vunpack.c.0.s8 %v263
    %v265 = vperm.slane %v259, %v264
    %v267 = vunpack.c.l.s4 1983009808
    %v268 = vunpack.c.0.s8 %v267
    %v269 = vperm.slane %v261, %v268
    %v270 = vrot.slane %v265, 4
    %v271 = vsel %vm190, %v270, %v253
    %v272 = vrot.slane %v253, 4
    %v273 = vsel %vm190, %v265, %v272
    %v275 = vunpack.c.l.s4 1934713408
    %v276 = vunpack.c.0.s8 %v275
    %v277 = vperm.slane %v271, %v276
    %v279 = vunpack.c.l.s4 1934713408
    %v280 = vunpack.c.0.s8 %v279
    %v281 = vperm.slane %v273, %v280
    %v282 = vrot.slane %v269, 4
    %v283 = vsel %vm190, %v282, %v257
    %v284 = vrot.slane %v257, 4
    %v285 = vsel %vm190, %v269, %v284
    %v287 = vunpack.c.l.s4 1934713408
    %v288 = vunpack.c.0.s8 %v287
    %v289 = vperm.slane %v283, %v288
    %v291 = vunpack.c.l.s4 1934713408
    %v292 = vunpack.c.0.s8 %v291
    %v293 = vperm.slane %v285, %v292
    %v294 = vrot.slane %v277, 4
    %v295 = vsel %vm190, 0.0, %v294
    %v296 = vrot.slane %v281, 4
    %v297 = vsel %vm190, 0.0, %v296
    %v298 = vrot.slane %v289, 4
    %v299 = vsel %vm190, 0.0, %v298
    %v300 = vrot.slane %v293, 4
    %v301 = vsel %vm190, 0.0, %v300
    %v302 = vsel %vm190, %v240, %v221
    %v304 = vunpack.c.l.s4 1983009808
    %v305 = vunpack.c.0.s8 %v304
    %v306 = vperm.slane %v302, %v305
    %v307 = vrot.slane %v241, 4
    %v308 = vsel %vm190, %v307, %v239
    %v310 = vunpack.c.l.s4 1983009808
    %v311 = vunpack.c.0.s8 %v310
    %v312 = vperm.slane %v308, %v311
    %v313 = vsel %vm190, %v244, %v233
    %v315 = vunpack.c.l.s4 1983009808
    %v316 = vunpack.c.0.s8 %v315
    %v317 = vperm.slane %v313, %v316
    %v318 = vrot.slane %v245, 4
    %v319 = vsel %vm190, %v318, %v243
    %v321 = vunpack.c.l.s4 1983009808
    %v322 = vunpack.c.0.s8 %v321
    %v323 = vperm.slane %v319, %v322
    %v324 = vrot.slane %v312, 4
    %v325 = vsel %vm190, %v324, %v306
    %v326 = vrot.slane %v306, 4
    %v327 = vsel %vm190, %v312, %v326
    %v329 = vunpack.c.l.s4 1934713408
    %v330 = vunpack.c.0.s8 %v329
    %v331 = vperm.slane %v325, %v330
    %v333 = vunpack.c.l.s4 1934713408
    %v334 = vunpack.c.0.s8 %v333
    %v335 = vperm.slane %v327, %v334
    %v336 = vrot.slane %v323, 4
    %v337 = vsel %vm190, %v336, %v317
    %v338 = vrot.slane %v317, 4
    %v339 = vsel %vm190, %v323, %v338
    %v341 = vunpack.c.l.s4 1934713408
    %v342 = vunpack.c.0.s8 %v341
    %v343 = vperm.slane %v337, %v342
    %v345 = vunpack.c.l.s4 1934713408
    %v346 = vunpack.c.0.s8 %v345
    %v347 = vperm.slane %v339, %v346
    %v348 = vrot.slane %v343, 4
    %v349 = vsel %vm190, %v348, %v331
    %v350 = vrot.slane %v331, 4
    %v351 = vsel %vm190, %v343, %v350
    %v352 = vrot.slane %v347, 4
    %v353 = vsel %vm190, %v352, %v335
    %v354 = vrot.slane %v335, 4
    %v355 = vsel %vm190, %v347, %v354
    %v356 = vsel %vm190, %v296, %v277
    %v358 = vunpack.c.l.s4 1983009808
    %v359 = vunpack.c.0.s8 %v358
    %v360 = vperm.slane %v356, %v359
    %v361 = vrot.slane %v297, 4
    %v362 = vsel %vm190, %v361, %v295
    %v364 = vunpack.c.l.s4 1983009808
    %v365 = vunpack.c.0.s8 %v364
    %v366 = vperm.slane %v362, %v365
    %v367 = vsel %vm190, %v300, %v289
    %v369 = vunpack.c.l.s4 1983009808
    %v370 = vunpack.c.0.s8 %v369
    %v371 = vperm.slane %v367, %v370
    %v372 = vrot.slane %v301, 4
    %v373 = vsel %vm190, %v372, %v299
    %v375 = vunpack.c.l.s4 1983009808
    %v376 = vunpack.c.0.s8 %v375
    %v377 = vperm.slane %v373, %v376
    %v378 = vrot.slane %v366, 4
    %v379 = vsel %vm190, %v378, %v360
    %v380 = vrot.slane %v360, 4
    %v381 = vsel %vm190, %v366, %v380
    %v383 = vunpack.c.l.s4 1934713408
    %v384 = vunpack.c.0.s8 %v383
    %v385 = vperm.slane %v379, %v384
    %v387 = vunpack.c.l.s4 1934713408
    %v388 = vunpack.c.0.s8 %v387
    %v389 = vperm.slane %v381, %v388
    %v390 = vrot.slane %v377, 4
    %v391 = vsel %vm190, %v390, %v371
    %v392 = vrot.slane %v371, 4
    %v393 = vsel %vm190, %v377, %v392
    %v395 = vunpack.c.l.s4 1934713408
    %v396 = vunpack.c.0.s8 %v395
    %v397 = vperm.slane %v391, %v396
    %v399 = vunpack.c.l.s4 1934713408
    %v400 = vunpack.c.0.s8 %v399
    %v401 = vperm.slane %v393, %v400
    %v402 = vrot.slane %v397, 4
    %v403 = vsel %vm190, %v402, %v385
    %v404 = vrot.slane %v385, 4
    %v405 = vsel %vm190, %v397, %v404
    %v406 = vrot.slane %v401, 4
    %v407 = vsel %vm190, %v406, %v389
    %v408 = vrot.slane %v389, 4
    %v409 = vsel %vm190, %v401, %v408
    %v410 = vpack.c.bf16 %v349, %v349
    %v411 = vpack.c.bf16 %v351, %v351
    %v412 = vpack.c.bf16 %v353, %v353
    %v413 = vpack.c.bf16 %v355, %v355
    %v414 = vpack.c.bf16 %v403, %v403
    %v415 = vpack.c.bf16 %v405, %v405
    %v416 = vpack.c.bf16 %v407, %v407
    %v417 = vpack.c.bf16 %v409, %v409
    %418 = vrot.lane.b32.xlu0 %v165, 96
    %v419 = vpop.permute.xlu0 %418
    %420 = vrot.lane.b32.xlu0 %v167, 96
    %v421 = vpop.permute.xlu0 %420
    %422 = vrot.lane.b32.xlu0 %v172, 96
    %v423 = vpop.permute.xlu0 %422
    %424 = vrot.lane.b32.xlu0 %v174, 96
    %v425 = vpop.permute.xlu0 %424
    %426 = vrot.lane.b32.xlu0 %v178, 96
    %v427 = vpop.permute.xlu0 %426
    %428 = vrot.lane.b32.xlu0 %v180, 96
    %v429 = vpop.permute.xlu0 %428
    %430 = vrot.lane.b32.xlu0 %v184, 96
    %v431 = vpop.permute.xlu0 %430
    %432 = vrot.lane.b32.xlu0 %v186, 96
    %v433 = vpop.permute.xlu0 %432
    %v442 = vrot.slane %v427, 4
    %v443 = vsel %vm190, %v442, %v419
    %v444 = vrot.slane %v419, 4
    %v445 = vsel %vm190, %v427, %v444
    %v447 = vunpack.c.l.s4 1983009808
    %v448 = vunpack.c.0.s8 %v447
    %v449 = vperm.slane %v443, %v448
    %v451 = vunpack.c.l.s4 1983009808
    %v452 = vunpack.c.0.s8 %v451
    %v453 = vperm.slane %v445, %v452
    %v454 = vrot.slane %v431, 4
    %v455 = vsel %vm190, %v454, %v423
    %v456 = vrot.slane %v423, 4
    %v457 = vsel %vm190, %v431, %v456
    %v459 = vunpack.c.l.s4 1983009808
    %v460 = vunpack.c.0.s8 %v459
    %v461 = vperm.slane %v455, %v460
    %v463 = vunpack.c.l.s4 1983009808
    %v464 = vunpack.c.0.s8 %v463
    %v465 = vperm.slane %v457, %v464
    %v466 = vrot.slane %v461, 4
    %v467 = vsel %vm190, %v466, %v449
    %v468 = vrot.slane %v449, 4
    %v469 = vsel %vm190, %v461, %v468
    %v471 = vunpack.c.l.s4 1934713408
    %v472 = vunpack.c.0.s8 %v471
    %v473 = vperm.slane %v467, %v472
    %v475 = vunpack.c.l.s4 1934713408
    %v476 = vunpack.c.0.s8 %v475
    %v477 = vperm.slane %v469, %v476
    %v478 = vrot.slane %v465, 4
    %v479 = vsel %vm190, %v478, %v453
    %v480 = vrot.slane %v453, 4
    %v481 = vsel %vm190, %v465, %v480
    %v483 = vunpack.c.l.s4 1934713408
    %v484 = vunpack.c.0.s8 %v483
    %v485 = vperm.slane %v479, %v484
    %v487 = vunpack.c.l.s4 1934713408
    %v488 = vunpack.c.0.s8 %v487
    %v489 = vperm.slane %v481, %v488
    %v490 = vrot.slane %v473, 4
    %v491 = vsel %vm190, 0.0, %v490
    %v492 = vrot.slane %v477, 4
    %v493 = vsel %vm190, 0.0, %v492
    %v494 = vrot.slane %v485, 4
    %v495 = vsel %vm190, 0.0, %v494
    %v496 = vrot.slane %v489, 4
    %v497 = vsel %vm190, 0.0, %v496
    %v498 = vrot.slane %v429, 4
    %v499 = vsel %vm190, %v498, %v421
    %v500 = vrot.slane %v421, 4
    %v501 = vsel %vm190, %v429, %v500
    %v503 = vunpack.c.l.s4 1983009808
    %v504 = vunpack.c.0.s8 %v503
    %v505 = vperm.slane %v499, %v504
    %v507 = vunpack.c.l.s4 1983009808
    %v508 = vunpack.c.0.s8 %v507
    %v509 = vperm.slane %v501, %v508
    %v510 = vrot.slane %v433, 4
    %v511 = vsel %vm190, %v510, %v425
    %v512 = vrot.slane %v425, 4
    %v513 = vsel %vm190, %v433, %v512
    %v515 = vunpack.c.l.s4 1983009808
    %v516 = vunpack.c.0.s8 %v515
    %v517 = vperm.slane %v511, %v516
    %v519 = vunpack.c.l.s4 1983009808
    %v520 = vunpack.c.0.s8 %v519
    %v521 = vperm.slane %v513, %v520
    %v522 = vrot.slane %v517, 4
    %v523 = vsel %vm190, %v522, %v505
    %v524 = vrot.slane %v505, 4
    %v525 = vsel %vm190, %v517, %v524
    %v527 = vunpack.c.l.s4 1934713408
    %v528 = vunpack.c.0.s8 %v527
    %v529 = vperm.slane %v523, %v528
    %v531 = vunpack.c.l.s4 1934713408
    %v532 = vunpack.c.0.s8 %v531
    %v533 = vperm.slane %v525, %v532
    %v534 = vrot.slane %v521, 4
    %v535 = vsel %vm190, %v534, %v509
    %v536 = vrot.slane %v509, 4
    %v537 = vsel %vm190, %v521, %v536
    %v539 = vunpack.c.l.s4 1934713408
    %v540 = vunpack.c.0.s8 %v539
    %v541 = vperm.slane %v535, %v540
    %v543 = vunpack.c.l.s4 1934713408
    %v544 = vunpack.c.0.s8 %v543
    %v545 = vperm.slane %v537, %v544
    %v546 = vrot.slane %v529, 4
    %v547 = vsel %vm190, 0.0, %v546
    %v548 = vrot.slane %v533, 4
    %v549 = vsel %vm190, 0.0, %v548
    %v550 = vrot.slane %v541, 4
    %v551 = vsel %vm190, 0.0, %v550
    %v552 = vrot.slane %v545, 4
    %v553 = vsel %vm190, 0.0, %v552
    %v554 = vsel %vm190, %v492, %v473
    %v556 = vunpack.c.l.s4 1983009808
    %v557 = vunpack.c.0.s8 %v556
    %v558 = vperm.slane %v554, %v557
    %v559 = vrot.slane %v493, 4
    %v560 = vsel %vm190, %v559, %v491
    %v562 = vunpack.c.l.s4 1983009808
    %v563 = vunpack.c.0.s8 %v562
    %v564 = vperm.slane %v560, %v563
    %v565 = vsel %vm190, %v496, %v485
    %v567 = vunpack.c.l.s4 1983009808
    %v568 = vunpack.c.0.s8 %v567
    %v569 = vperm.slane %v565, %v568
    %v570 = vrot.slane %v497, 4
    %v571 = vsel %vm190, %v570, %v495
    %v573 = vunpack.c.l.s4 1983009808
    %v574 = vunpack.c.0.s8 %v573
    %v575 = vperm.slane %v571, %v574
    %v576 = vrot.slane %v564, 4
    %v577 = vsel %vm190, %v576, %v558
    %v578 = vrot.slane %v558, 4
    %v579 = vsel %vm190, %v564, %v578
    %v581 = vunpack.c.l.s4 1934713408
    %v582 = vunpack.c.0.s8 %v581
    %v583 = vperm.slane %v577, %v582
    %v585 = vunpack.c.l.s4 1934713408
    %v586 = vunpack.c.0.s8 %v585
    %v587 = vperm.slane %v579, %v586
    %v588 = vrot.slane %v575, 4
    %v589 = vsel %vm190, %v588, %v569
    %v590 = vrot.slane %v569, 4
    %v591 = vsel %vm190, %v575, %v590
    %v593 = vunpack.c.l.s4 1934713408
    %v594 = vunpack.c.0.s8 %v593
    %v595 = vperm.slane %v589, %v594
    %v597 = vunpack.c.l.s4 1934713408
    %v598 = vunpack.c.0.s8 %v597
    %v599 = vperm.slane %v591, %v598
    %v600 = vrot.slane %v595, 4
    %v601 = vsel %vm190, %v600, %v583
    %v602 = vrot.slane %v583, 4
    %v603 = vsel %vm190, %v595, %v602
    %v604 = vrot.slane %v599, 4
    %v605 = vsel %vm190, %v604, %v587
    %v606 = vrot.slane %v587, 4
    %v607 = vsel %vm190, %v599, %v606
    %v608 = vsel %vm190, %v548, %v529
    %v610 = vunpack.c.l.s4 1983009808
    %v611 = vunpack.c.0.s8 %v610
    %v612 = vperm.slane %v608, %v611
    %v613 = vrot.slane %v549, 4
    %v614 = vsel %vm190, %v613, %v547
    %v616 = vunpack.c.l.s4 1983009808
    %v617 = vunpack.c.0.s8 %v616
    %v618 = vperm.slane %v614, %v617
    %v619 = vsel %vm190, %v552, %v541
    %v621 = vunpack.c.l.s4 1983009808
    %v622 = vunpack.c.0.s8 %v621
    %v623 = vperm.slane %v619, %v622
    %v624 = vrot.slane %v553, 4
    %v625 = vsel %vm190, %v624, %v551
    %v627 = vunpack.c.l.s4 1983009808
    %v628 = vunpack.c.0.s8 %v627
    %v629 = vperm.slane %v625, %v628
    %v630 = vrot.slane %v618, 4
    %v631 = vsel %vm190, %v630, %v612
    %v632 = vrot.slane %v612, 4
    %v633 = vsel %vm190, %v618, %v632
    %v635 = vunpack.c.l.s4 1934713408
    %v636 = vunpack.c.0.s8 %v635
    %v637 = vperm.slane %v631, %v636
    %v639 = vunpack.c.l.s4 1934713408
    %v640 = vunpack.c.0.s8 %v639
    %v641 = vperm.slane %v633, %v640
    %v642 = vrot.slane %v629, 4
    %v643 = vsel %vm190, %v642, %v623
    %v644 = vrot.slane %v623, 4
    %v645 = vsel %vm190, %v629, %v644
    %v647 = vunpack.c.l.s4 1934713408
    %v648 = vunpack.c.0.s8 %v647
    %v649 = vperm.slane %v643, %v648
    %v651 = vunpack.c.l.s4 1934713408
    %v652 = vunpack.c.0.s8 %v651
    %v653 = vperm.slane %v645, %v652
    %v654 = vrot.slane %v649, 4
    %v655 = vsel %vm190, %v654, %v637
    %v656 = vrot.slane %v637, 4
    %v657 = vsel %vm190, %v649, %v656
    %v658 = vrot.slane %v653, 4
    %v659 = vsel %vm190, %v658, %v641
    %v660 = vrot.slane %v641, 4
    %v661 = vsel %vm190, %v653, %v660
    %v662 = vpack.c.bf16 %v601, %v601
    %v663 = vpack.c.bf16 %v603, %v603
    %v664 = vpack.c.bf16 %v605, %v605
    %v665 = vpack.c.bf16 %v607, %v607
    %v666 = vpack.c.bf16 %v655, %v655
    %v667 = vpack.c.bf16 %v657, %v657
    %v668 = vpack.c.bf16 %v659, %v659
    %v669 = vpack.c.bf16 %v661, %v661
    %670 = vrot.lane.b32.xlu0 %v165, 64
    %v671 = vpop.permute.xlu0 %670
    %672 = vrot.lane.b32.xlu0 %v167, 64
    %v673 = vpop.permute.xlu0 %672
    %674 = vrot.lane.b32.xlu0 %v172, 64
    %v675 = vpop.permute.xlu0 %674
    %676 = vrot.lane.b32.xlu0 %v174, 64
    %v677 = vpop.permute.xlu0 %676
    %678 = vrot.lane.b32.xlu0 %v178, 64
    %v679 = vpop.permute.xlu0 %678
    %680 = vrot.lane.b32.xlu0 %v180, 64
    %v681 = vpop.permute.xlu0 %680
    %682 = vrot.lane.b32.xlu0 %v184, 64
    %v683 = vpop.permute.xlu0 %682
    %684 = vrot.lane.b32.xlu0 %v186, 64
    %v685 = vpop.permute.xlu0 %684
    %v694 = vrot.slane %v679, 4
    %v695 = vsel %vm190, %v694, %v671
    %v696 = vrot.slane %v671, 4
    %v697 = vsel %vm190, %v679, %v696
    %v699 = vunpack.c.l.s4 1983009808
    %v700 = vunpack.c.0.s8 %v699
    %v701 = vperm.slane %v695, %v700
    %v703 = vunpack.c.l.s4 1983009808
    %v704 = vunpack.c.0.s8 %v703
    %v705 = vperm.slane %v697, %v704
    %v706 = vrot.slane %v683, 4
    %v707 = vsel %vm190, %v706, %v675
    %v708 = vrot.slane %v675, 4
    %v709 = vsel %vm190, %v683, %v708
    %v711 = vunpack.c.l.s4 1983009808
    %v712 = vunpack.c.0.s8 %v711
    %v713 = vperm.slane %v707, %v712
    %v715 = vunpack.c.l.s4 1983009808
    %v716 = vunpack.c.0.s8 %v715
    %v717 = vperm.slane %v709, %v716
    %v718 = vrot.slane %v713, 4
    %v719 = vsel %vm190, %v718, %v701
    %v720 = vrot.slane %v701, 4
    %v721 = vsel %vm190, %v713, %v720
    %v723 = vunpack.c.l.s4 1934713408
    %v724 = vunpack.c.0.s8 %v723
    %v725 = vperm.slane %v719, %v724
    %v727 = vunpack.c.l.s4 1934713408
    %v728 = vunpack.c.0.s8 %v727
    %v729 = vperm.slane %v721, %v728
    %v730 = vrot.slane %v717, 4
    %v731 = vsel %vm190, %v730, %v705
    %v732 = vrot.slane %v705, 4
    %v733 = vsel %vm190, %v717, %v732
    %v735 = vunpack.c.l.s4 1934713408
    %v736 = vunpack.c.0.s8 %v735
    %v737 = vperm.slane %v731, %v736
    %v739 = vunpack.c.l.s4 1934713408
    %v740 = vunpack.c.0.s8 %v739
    %v741 = vperm.slane %v733, %v740
    %v742 = vrot.slane %v725, 4
    %v743 = vsel %vm190, 0.0, %v742
    %v744 = vrot.slane %v729, 4
    %v745 = vsel %vm190, 0.0, %v744
    %v746 = vrot.slane %v737, 4
    %v747 = vsel %vm190, 0.0, %v746
    %v748 = vrot.slane %v741, 4
    %v749 = vsel %vm190, 0.0, %v748
    %v750 = vrot.slane %v681, 4
    %v751 = vsel %vm190, %v750, %v673
    %v752 = vrot.slane %v673, 4
    %v753 = vsel %vm190, %v681, %v752
    %v755 = vunpack.c.l.s4 1983009808
    %v756 = vunpack.c.0.s8 %v755
    %v757 = vperm.slane %v751, %v756
    %v759 = vunpack.c.l.s4 1983009808
    %v760 = vunpack.c.0.s8 %v759
    %v761 = vperm.slane %v753, %v760
    %v762 = vrot.slane %v685, 4
    %v763 = vsel %vm190, %v762, %v677
    %v764 = vrot.slane %v677, 4
    %v765 = vsel %vm190, %v685, %v764
    %v767 = vunpack.c.l.s4 1983009808
    %v768 = vunpack.c.0.s8 %v767
    %v769 = vperm.slane %v763, %v768
    %v771 = vunpack.c.l.s4 1983009808
    %v772 = vunpack.c.0.s8 %v771
    %v773 = vperm.slane %v765, %v772
    %v774 = vrot.slane %v769, 4
    %v775 = vsel %vm190, %v774, %v757
    %v776 = vrot.slane %v757, 4
    %v777 = vsel %vm190, %v769, %v776
    %v779 = vunpack.c.l.s4 1934713408
    %v780 = vunpack.c.0.s8 %v779
    %v781 = vperm.slane %v775, %v780
    %v783 = vunpack.c.l.s4 1934713408
    %v784 = vunpack.c.0.s8 %v783
    %v785 = vperm.slane %v777, %v784
    %v786 = vrot.slane %v773, 4
    %v787 = vsel %vm190, %v786, %v761
    %v788 = vrot.slane %v761, 4
    %v789 = vsel %vm190, %v773, %v788
    %v791 = vunpack.c.l.s4 1934713408
    %v792 = vunpack.c.0.s8 %v791
    %v793 = vperm.slane %v787, %v792
    %v795 = vunpack.c.l.s4 1934713408
    %v796 = vunpack.c.0.s8 %v795
    %v797 = vperm.slane %v789, %v796
    %v798 = vrot.slane %v781, 4
    %v799 = vsel %vm190, 0.0, %v798
    %v800 = vrot.slane %v785, 4
    %v801 = vsel %vm190, 0.0, %v800
    %v802 = vrot.slane %v793, 4
    %v803 = vsel %vm190, 0.0, %v802
    %v804 = vrot.slane %v797, 4
    %v805 = vsel %vm190, 0.0, %v804
    %v806 = vsel %vm190, %v744, %v725
    %v808 = vunpack.c.l.s4 1983009808
    %v809 = vunpack.c.0.s8 %v808
    %v810 = vperm.slane %v806, %v809
    %v811 = vrot.slane %v745, 4
    %v812 = vsel %vm190, %v811, %v743
    %v814 = vunpack.c.l.s4 1983009808
    %v815 = vunpack.c.0.s8 %v814
    %v816 = vperm.slane %v812, %v815
    %v817 = vsel %vm190, %v748, %v737
    %v819 = vunpack.c.l.s4 1983009808
    %v820 = vunpack.c.0.s8 %v819
    %v821 = vperm.slane %v817, %v820
    %v822 = vrot.slane %v749, 4
    %v823 = vsel %vm190, %v822, %v747
    %v825 = vunpack.c.l.s4 1983009808
    %v826 = vunpack.c.0.s8 %v825
    %v827 = vperm.slane %v823, %v826
    %v828 = vrot.slane %v816, 4
    %v829 = vsel %vm190, %v828, %v810
    %v830 = vrot.slane %v810, 4
    %v831 = vsel %vm190, %v816, %v830
    %v833 = vunpack.c.l.s4 1934713408
    %v834 = vunpack.c.0.s8 %v833
    %v835 = vperm.slane %v829, %v834
    %v837 = vunpack.c.l.s4 1934713408
    %v838 = vunpack.c.0.s8 %v837
    %v839 = vperm.slane %v831, %v838
    %v840 = vrot.slane %v827, 4
    %v841 = vsel %vm190, %v840, %v821
    %v842 = vrot.slane %v821, 4
    %v843 = vsel %vm190, %v827, %v842
    %v845 = vunpack.c.l.s4 1934713408
    %v846 = vunpack.c.0.s8 %v845
    %v847 = vperm.slane %v841, %v846
    %v849 = vunpack.c.l.s4 1934713408
    %v850 = vunpack.c.0.s8 %v849
    %v851 = vperm.slane %v843, %v850
    %v852 = vrot.slane %v847, 4
    %v853 = vsel %vm190, %v852, %v835
    %v854 = vrot.slane %v835, 4
    %v855 = vsel %vm190, %v847, %v854
    %v856 = vrot.slane %v851, 4
    %v857 = vsel %vm190, %v856, %v839
    %v858 = vrot.slane %v839, 4
    %v859 = vsel %vm190, %v851, %v858
    %v860 = vsel %vm190, %v800, %v781
    %v862 = vunpack.c.l.s4 1983009808
    %v863 = vunpack.c.0.s8 %v862
    %v864 = vperm.slane %v860, %v863
    %v865 = vrot.slane %v801, 4
    %v866 = vsel %vm190, %v865, %v799
    %v868 = vunpack.c.l.s4 1983009808
    %v869 = vunpack.c.0.s8 %v868
    %v870 = vperm.slane %v866, %v869
    %v871 = vsel %vm190, %v804, %v793
    %v873 = vunpack.c.l.s4 1983009808
    %v874 = vunpack.c.0.s8 %v873
    %v875 = vperm.slane %v871, %v874
    %v876 = vrot.slane %v805, 4
    %v877 = vsel %vm190, %v876, %v803
    %v879 = vunpack.c.l.s4 1983009808
    %v880 = vunpack.c.0.s8 %v879
    %v881 = vperm.slane %v877, %v880
    %v882 = vrot.slane %v870, 4
    %v883 = vsel %vm190, %v882, %v864
    %v884 = vrot.slane %v864, 4
    %v885 = vsel %vm190, %v870, %v884
    %v887 = vunpack.c.l.s4 1934713408
    %v888 = vunpack.c.0.s8 %v887
    %v889 = vperm.slane %v883, %v888
    %v891 = vunpack.c.l.s4 1934713408
    %v892 = vunpack.c.0.s8 %v891
    %v893 = vperm.slane %v885, %v892
    %v894 = vrot.slane %v881, 4
    %v895 = vsel %vm190, %v894, %v875
    %v896 = vrot.slane %v875, 4
    %v897 = vsel %vm190, %v881, %v896
    %v899 = vunpack.c.l.s4 1934713408
    %v900 = vunpack.c.0.s8 %v899
    %v901 = vperm.slane %v895, %v900
    %v903 = vunpack.c.l.s4 1934713408
    %v904 = vunpack.c.0.s8 %v903
    %v905 = vperm.slane %v897, %v904
    %v906 = vrot.slane %v901, 4
    %v907 = vsel %vm190, %v906, %v889
    %v908 = vrot.slane %v889, 4
    %v909 = vsel %vm190, %v901, %v908
    %v910 = vrot.slane %v905, 4
    %v911 = vsel %vm190, %v910, %v893
    %v912 = vrot.slane %v893, 4
    %v913 = vsel %vm190, %v905, %v912
    %v914 = vpack.c.bf16 %v853, %v853
    %v915 = vpack.c.bf16 %v855, %v855
    %v916 = vpack.c.bf16 %v857, %v857
    %v917 = vpack.c.bf16 %v859, %v859
    %v918 = vpack.c.bf16 %v907, %v907
    %v919 = vpack.c.bf16 %v909, %v909
    %v920 = vpack.c.bf16 %v911, %v911
    %v921 = vpack.c.bf16 %v913, %v913
    %vm922 = vcmask 64512
    %v924 = vsel %vm922, %v410, 0
    %v927 = vsel %vm922, %v662, 0
    %929 = vmatpush.bf16.xpose.msra.mxu0 0
    %930 = vmatpush.bf16.xpose.msra.mxu0 0
    %931 = vmatpush.bf16.xpose.msra.mxu0 0
    %932 = vmatpush.bf16.xpose.msra.mxu0 0
    %933 = vmatpush.bf16.xpose.msra.mxu0 0
    %934 = vmatpush.bf16.xpose.msra.mxu0 0
    %935 = vmatpush.bf16.xpose.msra.mxu0 0
    %936 = vmatpush.bf16.xpose.msra.mxu0 %v927
    %937 = vmatmul.bf16.gmra.mxu0 %v924
    %v938 = vpop.f32.mrf.mxu0
    %v939 = vadd.f32 0.0, %v938
    %v940 = vpop.f32.mrf.mxu0
    %941 = vdwg.mxu0
    %v943 = vsel %vm922, %v411, 0
    %v946 = vsel %vm922, %v663, 0
    %948 = vmatpush.bf16.xpose.msra.mxu0 0
    %949 = vmatpush.bf16.xpose.msra.mxu0 0
    %950 = vmatpush.bf16.xpose.msra.mxu0 0
    %951 = vmatpush.bf16.xpose.msra.mxu0 0
    %952 = vmatpush.bf16.xpose.msra.mxu0 0
    %953 = vmatpush.bf16.xpose.msra.mxu0 0
    %954 = vmatpush.bf16.xpose.msra.mxu0 0
    %955 = vmatpush.bf16.xpose.msra.mxu0 %v946
    %956 = vmatmul.bf16.gmra.mxu0 %v943
    %v957 = vpop.f32.mrf.mxu0
    %v958 = vadd.f32 0.0, %v957
    %v959 = vpop.f32.mrf.mxu0
    %960 = vdwg.mxu0
    %v962 = vsel %vm922, %v412, 0
    %v965 = vsel %vm922, %v664, 0
    %967 = vmatpush.bf16.xpose.msra.mxu0 0
    %968 = vmatpush.bf16.xpose.msra.mxu0 0
    %969 = vmatpush.bf16.xpose.msra.mxu0 0
    %970 = vmatpush.bf16.xpose.msra.mxu0 0
    %971 = vmatpush.bf16.xpose.msra.mxu0 0
    %972 = vmatpush.bf16.xpose.msra.mxu0 0
    %973 = vmatpush.bf16.xpose.msra.mxu0 0
    %974 = vmatpush.bf16.xpose.msra.mxu0 %v965
    %975 = vmatmul.bf16.gmra.mxu0 %v962
    %v976 = vpop.f32.mrf.mxu0
    %v977 = vadd.f32 0.0, %v976
    %v978 = vpop.f32.mrf.mxu0
    %979 = vdwg.mxu0
    %v981 = vsel %vm922, %v413, 0
    %v984 = vsel %vm922, %v665, 0
    %986 = vmatpush.bf16.xpose.msra.mxu0 0
    %987 = vmatpush.bf16.xpose.msra.mxu0 0
    %988 = vmatpush.bf16.xpose.msra.mxu0 0
    %989 = vmatpush.bf16.xpose.msra.mxu0 0
    %990 = vmatpush.bf16.xpose.msra.mxu0 0
    %991 = vmatpush.bf16.xpose.msra.mxu0 0
    %992 = vmatpush.bf16.xpose.msra.mxu0 0
    %993 = vmatpush.bf16.xpose.msra.mxu0 %v984
    %994 = vmatmul.bf16.gmra.mxu0 %v981
    %v995 = vpop.f32.mrf.mxu0
    %v996 = vadd.f32 0.0, %v995
    %v997 = vpop.f32.mrf.mxu0
    %998 = vdwg.mxu0
    %v1000 = vsel %vm922, %v414, 0
    %v1003 = vsel %vm922, %v666, 0
    %1005 = vmatpush.bf16.xpose.msra.mxu0 0
    %1006 = vmatpush.bf16.xpose.msra.mxu0 0
    %1007 = vmatpush.bf16.xpose.msra.mxu0 0
    %1008 = vmatpush.bf16.xpose.msra.mxu0 0
    %1009 = vmatpush.bf16.xpose.msra.mxu0 0
    %1010 = vmatpush.bf16.xpose.msra.mxu0 0
    %1011 = vmatpush.bf16.xpose.msra.mxu0 0
    %1012 = vmatpush.bf16.xpose.msra.mxu0 %v1003
    %1013 = vmatmul.bf16.gmra.mxu0 %v1000
    %v1014 = vpop.f32.mrf.mxu0
    %v1015 = vadd.f32 0.0, %v1014
    %v1016 = vpop.f32.mrf.mxu0
    %1017 = vdwg.mxu0
    %v1019 = vsel %vm922, %v415, 0
    %v1022 = vsel %vm922, %v667, 0
    %1024 = vmatpush.bf16.xpose.msra.mxu0 0
    %1025 = vmatpush.bf16.xpose.msra.mxu0 0
    %1026 = vmatpush.bf16.xpose.msra.mxu0 0
    %1027 = vmatpush.bf16.xpose.msra.mxu0 0
    %1028 = vmatpush.bf16.xpose.msra.mxu0 0
    %1029 = vmatpush.bf16.xpose.msra.mxu0 0
    %1030 = vmatpush.bf16.xpose.msra.mxu0 0
    %1031 = vmatpush.bf16.xpose.msra.mxu0 %v1022
    %1032 = vmatmul.bf16.gmra.mxu0 %v1019
    %v1033 = vpop.f32.mrf.mxu0
    %v1034 = vadd.f32 0.0, %v1033
    %v1035 = vpop.f32.mrf.mxu0
    %1036 = vdwg.mxu0
    %v1038 = vsel %vm922, %v416, 0
    %v1041 = vsel %vm922, %v668, 0
    %1043 = vmatpush.bf16.xpose.msra.mxu0 0
    %1044 = vmatpush.bf16.xpose.msra.mxu0 0
    %1045 = vmatpush.bf16.xpose.msra.mxu0 0
    %1046 = vmatpush.bf16.xpose.msra.mxu0 0
    %1047 = vmatpush.bf16.xpose.msra.mxu0 0
    %1048 = vmatpush.bf16.xpose.msra.mxu0 0
    %1049 = vmatpush.bf16.xpose.msra.mxu0 0
    %1050 = vmatpush.bf16.xpose.msra.mxu0 %v1041
    %1051 = vmatmul.bf16.gmra.mxu0 %v1038
    %v1052 = vpop.f32.mrf.mxu0
    %v1053 = vadd.f32 0.0, %v1052
    %v1054 = vpop.f32.mrf.mxu0
    %1055 = vdwg.mxu0
    %v1057 = vsel %vm922, %v417, 0
    %v1060 = vsel %vm922, %v669, 0
    %1062 = vmatpush.bf16.xpose.msra.mxu0 0
    %1063 = vmatpush.bf16.xpose.msra.mxu0 0
    %1064 = vmatpush.bf16.xpose.msra.mxu0 0
    %1065 = vmatpush.bf16.xpose.msra.mxu0 0
    %1066 = vmatpush.bf16.xpose.msra.mxu0 0
    %1067 = vmatpush.bf16.xpose.msra.mxu0 0
    %1068 = vmatpush.bf16.xpose.msra.mxu0 0
    %1069 = vmatpush.bf16.xpose.msra.mxu0 %v1060
    %1070 = vmatmul.bf16.gmra.mxu0 %v1057
    %v1071 = vpop.f32.mrf.mxu0
    %v1072 = vadd.f32 0.0, %v1071
    %v1073 = vpop.f32.mrf.mxu0
    %1074 = vdwg.mxu0
    %v1075 = vmul.f32 %v939, 0.35355338
    %v1076 = vmul.f32 %v958, 0.35355338
    %v1077 = vmul.f32 %v977, 0.35355338
    %v1078 = vmul.f32 %v996, 0.35355338
    %v1079 = vmul.f32 %v1015, 0.35355338
    %v1080 = vmul.f32 %v1034, 0.35355338
    %v1081 = vmul.f32 %v1053, 0.35355338
    %v1082 = vmul.f32 %v1072, 0.35355338
    %v1083 = vld [vmem:[#allocation2] sm:$0x1]
    %v1084 = vld [vmem:[#allocation2 + $0x1] sm:$0x1]
    %v1085 = vld [vmem:[#allocation2 + $0x2] sm:$0x1]
    %v1086 = vld [vmem:[#allocation2 + $0x3] sm:$0x1]
    %v1087 = vld [vmem:[#allocation2 + $0x4] sm:$0x1]
    %v1088 = vld [vmem:[#allocation2 + $0x5] sm:$0x1]
    %v1089 = vld [vmem:[#allocation2 + $0x6] sm:$0x1]
    %v1090 = vld [vmem:[#allocation2 + $0x7] sm:$0x1]
    %v1099 = vperm.slane %v1083, 0
    %v1100 = vperm.slane %v1084, 0
    %v1101 = vperm.slane %v1085, 0
    %v1102 = vperm.slane %v1086, 0
    %v1103 = vperm.slane %v1087, 0
    %v1104 = vperm.slane %v1088, 0
    %v1105 = vperm.slane %v1089, 0
    %v1106 = vperm.slane %v1090, 0
    %v1115 = vadd.f32 %v1075, %v1099
    %v1116 = vadd.f32 %v1076, %v1100
    %v1117 = vadd.f32 %v1077, %v1101
    %v1118 = vadd.f32 %v1078, %v1102
    %v1119 = vadd.f32 %v1079, %v1103
    %v1120 = vadd.f32 %v1080, %v1104
    %v1121 = vadd.f32 %v1081, %v1105
    %v1122 = vadd.f32 %v1082, %v1106
    %v1123 = vsel %vm922, %v1115, -inf
    %1124 = vmax.xlane.f32.xlu0 %v1123
    %v1125 = vpop.xlane.xlu0 %1124
    %v1126 = vsel %vm922, %v1116, -inf
    %1127 = vmax.xlane.f32.xlu0 %v1126
    %v1128 = vpop.xlane.xlu0 %1127
    %v1129 = vsel %vm922, %v1117, -inf
    %1130 = vmax.xlane.f32.xlu0 %v1129
    %v1131 = vpop.xlane.xlu0 %1130
    %v1132 = vsel %vm922, %v1118, -inf
    %1133 = vmax.xlane.f32.xlu0 %v1132
    %v1134 = vpop.xlane.xlu0 %1133
    %v1135 = vsel %vm922, %v1119, -inf
    %1136 = vmax.xlane.f32.xlu0 %v1135
    %v1137 = vpop.xlane.xlu0 %1136
    %v1138 = vsel %vm922, %v1120, -inf
    %1139 = vmax.xlane.f32.xlu0 %v1138
    %v1140 = vpop.xlane.xlu0 %1139
    %v1141 = vsel %vm922, %v1121, -inf
    %1142 = vmax.xlane.f32.xlu0 %v1141
    %v1143 = vpop.xlane.xlu0 %1142
    %v1144 = vsel %vm922, %v1122, -inf
    %1145 = vmax.xlane.f32.xlu0 %v1144
    %v1146 = vpop.xlane.xlu0 %1145
    %v1147 = vsub.f32 %v1115, %v1125
    %v1148 = vsub.f32 %v1116, %v1128
    %v1149 = vsub.f32 %v1117, %v1131
    %v1150 = vsub.f32 %v1118, %v1134
    %v1151 = vsub.f32 %v1119, %v1137
    %v1152 = vsub.f32 %v1120, %v1140
    %v1153 = vsub.f32 %v1121, %v1143
    %v1154 = vsub.f32 %v1122, %v1146
    %v1155 = vmul.f32 %v1147, 1.442695
    %v1156 = vpow.pop %v1155
    %v1157 = vmul.f32 %v1148, 1.442695
    %v1158 = vpow.pop %v1157
    %v1159 = vmul.f32 %v1149, 1.442695
    %v1160 = vpow.pop %v1159
    %v1161 = vmul.f32 %v1150, 1.442695
    %v1162 = vpow.pop %v1161
    %v1163 = vmul.f32 %v1151, 1.442695
    %v1164 = vpow.pop %v1163
    %v1165 = vmul.f32 %v1152, 1.442695
    %v1166 = vpow.pop %v1165
    %v1167 = vmul.f32 %v1153, 1.442695
    %v1168 = vpow.pop %v1167
    %v1169 = vmul.f32 %v1154, 1.442695
    %v1170 = vpow.pop %v1169
    %v1171 = vsel %vm922, %v1156, 0.0
    %1172 = vadd.xlane.f32.xlu0 %v1171
    %v1173 = vpop.xlane.xlu0 %1172
    %v1174 = vsel %vm922, %v1158, 0.0
    %1175 = vadd.xlane.f32.xlu0 %v1174
    %v1176 = vpop.xlane.xlu0 %1175
    %v1177 = vsel %vm922, %v1160, 0.0
    %1178 = vadd.xlane.f32.xlu0 %v1177
    %v1179 = vpop.xlane.xlu0 %1178
    %v1180 = vsel %vm922, %v1162, 0.0
    %1181 = vadd.xlane.f32.xlu0 %v1180
    %v1182 = vpop.xlane.xlu0 %1181
    %v1183 = vsel %vm922, %v1164, 0.0
    %1184 = vadd.xlane.f32.xlu0 %v1183
    %v1185 = vpop.xlane.xlu0 %1184
    %v1186 = vsel %vm922, %v1166, 0.0
    %1187 = vadd.xlane.f32.xlu0 %v1186
    %v1188 = vpop.xlane.xlu0 %1187
    %v1189 = vsel %vm922, %v1168, 0.0
    %1190 = vadd.xlane.f32.xlu0 %v1189
    %v1191 = vpop.xlane.xlu0 %1190
    %v1192 = vsel %vm922, %v1170, 0.0
    %1193 = vadd.xlane.f32.xlu0 %v1192
    %v1194 = vpop.xlane.xlu0 %1193
    %v1195 = vrcp.pop %v1173
    %v1196 = vrcp.pop %v1176
    %v1197 = vrcp.pop %v1179
    %v1198 = vrcp.pop %v1182
    %v1199 = vrcp.pop %v1185
    %v1200 = vrcp.pop %v1188
    %v1201 = vrcp.pop %v1191
    %v1202 = vrcp.pop %v1194
    %v1203 = vmul.f32 %v1156, %v1195
    %v1204 = vmul.f32 %v1158, %v1196
    %v1205 = vmul.f32 %v1160, %v1197
    %v1206 = vmul.f32 %v1162, %v1198
    %v1207 = vmul.f32 %v1164, %v1199
    %v1208 = vmul.f32 %v1166, %v1200
    %v1209 = vmul.f32 %v1168, %v1201
    %v1210 = vmul.f32 %v1170, %v1202
    %v1211 = vpack.c.bf16 %v1203, %v1203
    %v1212 = vpack.c.bf16 %v1204, %v1204
    %v1213 = vpack.c.bf16 %v1205, %v1205
    %v1214 = vpack.c.bf16 %v1206, %v1206
    %v1215 = vpack.c.bf16 %v1207, %v1207
    %v1216 = vpack.c.bf16 %v1208, %v1208
    %v1217 = vpack.c.bf16 %v1209, %v1209
    %v1218 = vpack.c.bf16 %v1210, %v1210
    %v1220 = vsel %vm922, %v1211, 0
    %vm1222 = vcmask 1043456
    %v1224 = vsel %vm1222, %v914, 0
    %1226 = vmatpush.bf16.msra.mxu0 0
    %1227 = vmatpush.bf16.msra.mxu0 0
    %1228 = vmatpush.bf16.msra.mxu0 0
    %1229 = vmatpush.bf16.msra.mxu0 0
    %1230 = vmatpush.bf16.msra.mxu0 0
    %1231 = vmatpush.bf16.msra.mxu0 0
    %1232 = vmatpush.bf16.msra.mxu0 0
    %1233 = vmatpush.bf16.msra.mxu0 %v1224
    %1234 = vmatmul.bf16.gmra.mxu0 %v1220
    %v1235 = vpop.f32.mrf.mxu0
    %v1236 = vadd.f32 0.0, %v1235
    %v1237 = vpop.f32.mrf.mxu0
    %1238 = vdwg.mxu0
    %v1240 = vsel %vm922, %v1212, 0
    %v1243 = vsel %vm1222, %v915, 0
    %1245 = vmatpush.bf16.msra.mxu0 0
    %1246 = vmatpush.bf16.msra.mxu0 0
    %1247 = vmatpush.bf16.msra.mxu0 0
    %1248 = vmatpush.bf16.msra.mxu0 0
    %1249 = vmatpush.bf16.msra.mxu0 0
    %1250 = vmatpush.bf16.msra.mxu0 0
    %1251 = vmatpush.bf16.msra.mxu0 0
    %1252 = vmatpush.bf16.msra.mxu0 %v1243
    %1253 = vmatmul.bf16.gmra.mxu0 %v1240
    %v1254 = vpop.f32.mrf.mxu0
    %v1255 = vadd.f32 0.0, %v1254
    %v1256 = vpop.f32.mrf.mxu0
    %1257 = vdwg.mxu0
    %v1259 = vsel %vm922, %v1213, 0
    %v1262 = vsel %vm1222, %v916, 0
    %1264 = vmatpush.bf16.msra.mxu0 0
    %1265 = vmatpush.bf16.msra.mxu0 0
    %1266 = vmatpush.bf16.msra.mxu0 0
    %1267 = vmatpush.bf16.msra.mxu0 0
    %1268 = vmatpush.bf16.msra.mxu0 0
    %1269 = vmatpush.bf16.msra.mxu0 0
    %1270 = vmatpush.bf16.msra.mxu0 0
    %1271 = vmatpush.bf16.msra.mxu0 %v1262
    %1272 = vmatmul.bf16.gmra.mxu0 %v1259
    %v1273 = vpop.f32.mrf.mxu0
    %v1274 = vadd.f32 0.0, %v1273
    %v1275 = vpop.f32.mrf.mxu0
    %1276 = vdwg.mxu0
    %v1278 = vsel %vm922, %v1214, 0
    %v1281 = vsel %vm1222, %v917, 0
    %1283 = vmatpush.bf16.msra.mxu0 0
    %1284 = vmatpush.bf16.msra.mxu0 0
    %1285 = vmatpush.bf16.msra.mxu0 0
    %1286 = vmatpush.bf16.msra.mxu0 0
    %1287 = vmatpush.bf16.msra.mxu0 0
    %1288 = vmatpush.bf16.msra.mxu0 0
    %1289 = vmatpush.bf16.msra.mxu0 0
    %1290 = vmatpush.bf16.msra.mxu0 %v1281
    %1291 = vmatmul.bf16.gmra.mxu0 %v1278
    %v1292 = vpop.f32.mrf.mxu0
    %v1293 = vadd.f32 0.0, %v1292
    %v1294 = vpop.f32.mrf.mxu0
    %1295 = vdwg.mxu0
    %v1297 = vsel %vm922, %v1215, 0
    %v1300 = vsel %vm1222, %v918, 0
    %1302 = vmatpush.bf16.msra.mxu0 0
    %1303 = vmatpush.bf16.msra.mxu0 0
    %1304 = vmatpush.bf16.msra.mxu0 0
    %1305 = vmatpush.bf16.msra.mxu0 0
    %1306 = vmatpush.bf16.msra.mxu0 0
    %1307 = vmatpush.bf16.msra.mxu0 0
    %1308 = vmatpush.bf16.msra.mxu0 0
    %1309 = vmatpush.bf16.msra.mxu0 %v1300
    %1310 = vmatmul.bf16.gmra.mxu0 %v1297
    %v1311 = vpop.f32.mrf.mxu0
    %v1312 = vadd.f32 0.0, %v1311
    %v1313 = vpop.f32.mrf.mxu0
    %1314 = vdwg.mxu0
    %v1316 = vsel %vm922, %v1216, 0
    %v1319 = vsel %vm1222, %v919, 0
    %1321 = vmatpush.bf16.msra.mxu0 0
    %1322 = vmatpush.bf16.msra.mxu0 0
    %1323 = vmatpush.bf16.msra.mxu0 0
    %1324 = vmatpush.bf16.msra.mxu0 0
    %1325 = vmatpush.bf16.msra.mxu0 0
    %1326 = vmatpush.bf16.msra.mxu0 0
    %1327 = vmatpush.bf16.msra.mxu0 0
    %1328 = vmatpush.bf16.msra.mxu0 %v1319
    %1329 = vmatmul.bf16.gmra.mxu0 %v1316
    %v1330 = vpop.f32.mrf.mxu0
    %v1331 = vadd.f32 0.0, %v1330
    %v1332 = vpop.f32.mrf.mxu0
    %1333 = vdwg.mxu0
    %v1335 = vsel %vm922, %v1217, 0
    %v1338 = vsel %vm1222, %v920, 0
    %1340 = vmatpush.bf16.msra.mxu0 0
    %1341 = vmatpush.bf16.msra.mxu0 0
    %1342 = vmatpush.bf16.msra.mxu0 0
    %1343 = vmatpush.bf16.msra.mxu0 0
    %1344 = vmatpush.bf16.msra.mxu0 0
    %1345 = vmatpush.bf16.msra.mxu0 0
    %1346 = vmatpush.bf16.msra.mxu0 0
    %1347 = vmatpush.bf16.msra.mxu0 %v1338
    %1348 = vmatmul.bf16.gmra.mxu0 %v1335
    %v1349 = vpop.f32.mrf.mxu0
    %v1350 = vadd.f32 0.0, %v1349
    %v1351 = vpop.f32.mrf.mxu0
    %1352 = vdwg.mxu0
    %v1354 = vsel %vm922, %v1218, 0
    %v1357 = vsel %vm1222, %v921, 0
    %1359 = vmatpush.bf16.msra.mxu0 0
    %1360 = vmatpush.bf16.msra.mxu0 0
    %1361 = vmatpush.bf16.msra.mxu0 0
    %1362 = vmatpush.bf16.msra.mxu0 0
    %1363 = vmatpush.bf16.msra.mxu0 0
    %1364 = vmatpush.bf16.msra.mxu0 0
    %1365 = vmatpush.bf16.msra.mxu0 0
    %1366 = vmatpush.bf16.msra.mxu0 %v1357
    %1367 = vmatmul.bf16.gmra.mxu0 %v1354
    %v1368 = vpop.f32.mrf.mxu0
    %v1369 = vadd.f32 0.0, %v1368
    %v1370 = vpop.f32.mrf.mxu0
    %1371 = vdwg.mxu0
    %v1372 = vrot.slane %v1274, 4
    %v1373 = vsel %vm190, %v1372, %v1236
    %v1374 = vrot.slane %v1236, 4
    %v1375 = vsel %vm190, %v1274, %v1374
    %v1377 = vunpack.c.l.s4 1983009808
    %v1378 = vunpack.c.0.s8 %v1377
    %v1379 = vperm.slane %v1373, %v1378
    %v1381 = vunpack.c.l.s4 1983009808
    %v1382 = vunpack.c.0.s8 %v1381
    %v1383 = vperm.slane %v1375, %v1382
    %v1384 = vrot.slane %v1293, 4
    %v1385 = vsel %vm190, %v1384, %v1255
    %v1386 = vrot.slane %v1255, 4
    %v1387 = vsel %vm190, %v1293, %v1386
    %v1389 = vunpack.c.l.s4 1983009808
    %v1390 = vunpack.c.0.s8 %v1389
    %v1391 = vperm.slane %v1385, %v1390
    %v1393 = vunpack.c.l.s4 1983009808
    %v1394 = vunpack.c.0.s8 %v1393
    %v1395 = vperm.slane %v1387, %v1394
    %v1396 = vrot.slane %v1391, 4
    %v1397 = vsel %vm190, %v1396, %v1379
    %v1398 = vrot.slane %v1379, 4
    %v1399 = vsel %vm190, %v1391, %v1398
    %v1401 = vunpack.c.l.s4 1934713408
    %v1402 = vunpack.c.0.s8 %v1401
    %v1403 = vperm.slane %v1397, %v1402
    %v1405 = vunpack.c.l.s4 1934713408
    %v1406 = vunpack.c.0.s8 %v1405
    %v1407 = vperm.slane %v1399, %v1406
    %v1408 = vrot.slane %v1395, 4
    %v1409 = vsel %vm190, %v1408, %v1383
    %v1410 = vrot.slane %v1383, 4
    %v1411 = vsel %vm190, %v1395, %v1410
    %v1413 = vunpack.c.l.s4 1934713408
    %v1414 = vunpack.c.0.s8 %v1413
    %v1415 = vperm.slane %v1409, %v1414
    %v1417 = vunpack.c.l.s4 1934713408
    %v1418 = vunpack.c.0.s8 %v1417
    %v1419 = vperm.slane %v1411, %v1418
    %v1420 = vrot.slane %v1403, 4
    %v1421 = vsel %vm190, 0.0, %v1420
    %v1422 = vrot.slane %v1407, 4
    %v1423 = vsel %vm190, 0.0, %v1422
    %v1424 = vrot.slane %v1415, 4
    %v1425 = vsel %vm190, 0.0, %v1424
    %v1426 = vrot.slane %v1419, 4
    %v1427 = vsel %vm190, 0.0, %v1426
    %v1428 = vrot.slane %v1350, 4
    %v1429 = vsel %vm190, %v1428, %v1312
    %v1430 = vrot.slane %v1312, 4
    %v1431 = vsel %vm190, %v1350, %v1430
    %v1433 = vunpack.c.l.s4 1983009808
    %v1434 = vunpack.c.0.s8 %v1433
    %v1435 = vperm.slane %v1429, %v1434
    %v1437 = vunpack.c.l.s4 1983009808
    %v1438 = vunpack.c.0.s8 %v1437
    %v1439 = vperm.slane %v1431, %v1438
    %v1440 = vrot.slane %v1369, 4
    %v1441 = vsel %vm190, %v1440, %v1331
    %v1442 = vrot.slane %v1331, 4
    %v1443 = vsel %vm190, %v1369, %v1442
    %v1445 = vunpack.c.l.s4 1983009808
    %v1446 = vunpack.c.0.s8 %v1445
    %v1447 = vperm.slane %v1441, %v1446
    %v1449 = vunpack.c.l.s4 1983009808
    %v1450 = vunpack.c.0.s8 %v1449
    %v1451 = vperm.slane %v1443, %v1450
    %v1452 = vrot.slane %v1447, 4
    %v1453 = vsel %vm190, %v1452, %v1435
    %v1454 = vrot.slane %v1435, 4
    %v1455 = vsel %vm190, %v1447, %v1454
    %v1457 = vunpack.c.l.s4 1934713408
    %v1458 = vunpack.c.0.s8 %v1457
    %v1459 = vperm.slane %v1453, %v1458
    %v1461 = vunpack.c.l.s4 1934713408
    %v1462 = vunpack.c.0.s8 %v1461
    %v1463 = vperm.slane %v1455, %v1462
    %v1464 = vrot.slane %v1451, 4
    %v1465 = vsel %vm190, %v1464, %v1439
    %v1466 = vrot.slane %v1439, 4
    %v1467 = vsel %vm190, %v1451, %v1466
    %v1469 = vunpack.c.l.s4 1934713408
    %v1470 = vunpack.c.0.s8 %v1469
    %v1471 = vperm.slane %v1465, %v1470
    %v1473 = vunpack.c.l.s4 1934713408
    %v1474 = vunpack.c.0.s8 %v1473
    %v1475 = vperm.slane %v1467, %v1474
    %v1476 = vrot.slane %v1459, 4
    %v1477 = vsel %vm190, 0.0, %v1476
    %v1478 = vrot.slane %v1463, 4
    %v1479 = vsel %vm190, 0.0, %v1478
    %v1480 = vrot.slane %v1471, 4
    %v1481 = vsel %vm190, 0.0, %v1480
    %v1482 = vrot.slane %v1475, 4
    %v1483 = vsel %vm190, 0.0, %v1482
    %v1484 = vsel %vm190, %v1422, %v1403
    %v1486 = vunpack.c.l.s4 1983009808
    %v1487 = vunpack.c.0.s8 %v1486
    %v1488 = vperm.slane %v1484, %v1487
    %v1489 = vrot.slane %v1423, 4
    %v1490 = vsel %vm190, %v1489, %v1421
    %v1492 = vunpack.c.l.s4 1983009808
    %v1493 = vunpack.c.0.s8 %v1492
    %v1494 = vperm.slane %v1490, %v1493
    %v1495 = vsel %vm190, %v1426, %v1415
    %v1497 = vunpack.c.l.s4 1983009808
    %v1498 = vunpack.c.0.s8 %v1497
    %v1499 = vperm.slane %v1495, %v1498
    %v1500 = vrot.slane %v1427, 4
    %v1501 = vsel %vm190, %v1500, %v1425
    %v1503 = vunpack.c.l.s4 1983009808
    %v1504 = vunpack.c.0.s8 %v1503
    %v1505 = vperm.slane %v1501, %v1504
    %v1506 = vrot.slane %v1494, 4
    %v1507 = vsel %vm190, %v1506, %v1488
    %v1508 = vrot.slane %v1488, 4
    %v1509 = vsel %vm190, %v1494, %v1508
    %v1511 = vunpack.c.l.s4 1934713408
    %v1512 = vunpack.c.0.s8 %v1511
    %v1513 = vperm.slane %v1507, %v1512
    %v1515 = vunpack.c.l.s4 1934713408
    %v1516 = vunpack.c.0.s8 %v1515
    %v1517 = vperm.slane %v1509, %v1516
    %v1518 = vrot.slane %v1505, 4
    %v1519 = vsel %vm190, %v1518, %v1499
    %v1520 = vrot.slane %v1499, 4
    %v1521 = vsel %vm190, %v1505, %v1520
    %v1523 = vunpack.c.l.s4 1934713408
    %v1524 = vunpack.c.0.s8 %v1523
    %v1525 = vperm.slane %v1519, %v1524
    %v1527 = vunpack.c.l.s4 1934713408
    %v1528 = vunpack.c.0.s8 %v1527
    %v1529 = vperm.slane %v1521, %v1528
    %v1530 = vrot.slane %v1525, 4
    %v1531 = vsel %vm190, %v1530, %v1513
    %v1532 = vrot.slane %v1513, 4
    %v1533 = vsel %vm190, %v1525, %v1532
    %v1534 = vrot.slane %v1529, 4
    %v1535 = vsel %vm190, %v1534, %v1517
    %v1536 = vrot.slane %v1517, 4
    %v1537 = vsel %vm190, %v1529, %v1536
    %v1538 = vsel %vm190, %v1478, %v1459
    %v1540 = vunpack.c.l.s4 1983009808
    %v1541 = vunpack.c.0.s8 %v1540
    %v1542 = vperm.slane %v1538, %v1541
    %v1543 = vrot.slane %v1479, 4
    %v1544 = vsel %vm190, %v1543, %v1477
    %v1546 = vunpack.c.l.s4 1983009808
    %v1547 = vunpack.c.0.s8 %v1546
    %v1548 = vperm.slane %v1544, %v1547
    %v1549 = vsel %vm190, %v1482, %v1471
    %v1551 = vunpack.c.l.s4 1983009808
    %v1552 = vunpack.c.0.s8 %v1551
    %v1553 = vperm.slane %v1549, %v1552
    %v1554 = vrot.slane %v1483, 4
    %v1555 = vsel %vm190, %v1554, %v1481
    %v1557 = vunpack.c.l.s4 1983009808
    %v1558 = vunpack.c.0.s8 %v1557
    %v1559 = vperm.slane %v1555, %v1558
    %v1560 = vrot.slane %v1548, 4
    %v1561 = vsel %vm190, %v1560, %v1542
    %v1562 = vrot.slane %v1542, 4
    %v1563 = vsel %vm190, %v1548, %v1562
    %v1565 = vunpack.c.l.s4 1934713408
    %v1566 = vunpack.c.0.s8 %v1565
    %v1567 = vperm.slane %v1561, %v1566
    %v1569 = vunpack.c.l.s4 1934713408
    %v1570 = vunpack.c.0.s8 %v1569
    %v1571 = vperm.slane %v1563, %v1570
    %v1572 = vrot.slane %v1559, 4
    %v1573 = vsel %vm190, %v1572, %v1553
    %v1574 = vrot.slane %v1553, 4
    %v1575 = vsel %vm190, %v1559, %v1574
    %v1577 = vunpack.c.l.s4 1934713408
    %v1578 = vunpack.c.0.s8 %v1577
    %v1579 = vperm.slane %v1573, %v1578
    %v1581 = vunpack.c.l.s4 1934713408
    %v1582 = vunpack.c.0.s8 %v1581
    %v1583 = vperm.slane %v1575, %v1582
    %v1584 = vrot.slane %v1579, 4
    %v1585 = vsel %vm190, %v1584, %v1567
    %v1586 = vrot.slane %v1567, 4
    %v1587 = vsel %vm190, %v1579, %v1586
    %v1588 = vrot.slane %v1583, 4
    %v1589 = vsel %vm190, %v1588, %v1571
    %v1590 = vrot.slane %v1571, 4
    %v1591 = vsel %vm190, %v1583, %v1590
    %1594 = vrot.lane.b32.xlu0 %v1533, 8
    %v1595 = vpop.permute.xlu0 %1594
    %1596 = vrot.lane.b32.xlu0 %v1587, 8
    %v1597 = vpop.permute.xlu0 %1596
    %1602 = vrot.lane.b32.xlu0 %v1535, 16
    %v1603 = vpop.permute.xlu0 %1602
    %1604 = vrot.lane.b32.xlu0 %v1589, 16
    %v1605 = vpop.permute.xlu0 %1604
    %1610 = vrot.lane.b32.xlu0 %v1537, 24
    %v1611 = vpop.permute.xlu0 %1610
    %1612 = vrot.lane.b32.xlu0 %v1591, 24
    %v1613 = vpop.permute.xlu0 %1612
    %v1616 = vsel %vm922, %v1531, %v1595
    %v1617 = vsel %vm922, %v1585, %v1597
    %vm1618 = vcmask 130048
    %v1619 = vsel %vm1618, %v1616, %v1603
    %v1620 = vsel %vm1618, %v1617, %v1605
    %vm1621 = vcmask 195584
    %v1622 = vsel %vm1621, %v1619, %v1611
    %v1623 = vsel %vm1621, %v1620, %v1613
    %v1624 = vpack.c.bf16 %v1623, %v1622
    %v1625 = vld [vmem:[%s3] sm:$0xf]
    %v1626 = vld [vmem:[%s3 + $0x4] sm:$0xf]
    %v1627 = vld [vmem:[%s3 + $0x8] sm:$0xf]
    %v1628 = vld [vmem:[%s3 + $0xc] sm:$0xf]
    %v1629 = vperm.slane %v75, 1
    %v1634 = vunpack.c.l.b16 %v1625
    %v1635 = vunpack.c.l.b16 %v1626
    %v1636 = vunpack.c.l.b16 %v1627
    %v1637 = vunpack.c.l.b16 %v1628
    %v1638 = vpack.c.b16 %v1635, %v1634
    %v1639 = vpack.c.b16 %v1637, %v1636
    %v1643 = vsel %vm76, %v1624, 0
    %1645 = vmatpush.bf16.msra.mxu0 0
    %1646 = vmatpush.bf16.msra.mxu0 0
    %1647 = vmatpush.bf16.msra.mxu0 0
    %1648 = vmatpush.bf16.msra.mxu0 0
    %1649 = vmatpush.bf16.msra.mxu0 0
    %1650 = vmatpush.bf16.msra.mxu0 0
    %1651 = vmatpush.bf16.msra.mxu0 %v1639
    %1652 = vmatpush.bf16.msra.mxu0 %v1638
    %1653 = vmatmul.bf16.gmra.mxu0 %v1643
    %v1654 = vpop.f32.mrf.mxu0
    %v1655 = vadd.f32 %v1629, %v1654
    %v1656 = vpop.f32.mrf.mxu0
    %v1657 = vadd.f32 %v1629, %v1656
    %1658 = vdwg.mxu0
    %v1659 = vadd.f32 %v73, %v1655
    %v1660 = vadd.f32 %v74, %v1657
    %v1661 = vsel %vm76, %v1659, 0.0
    %1662 = vadd.xlane.f32.xlu0 %v1661
    %v1663 = vpop.xlane.xlu0 %1662
    %v1664 = vsel %vm76, %v1660, 0.0
    %1665 = vadd.xlane.f32.xlu0 %v1664
    %v1666 = vpop.xlane.xlu0 %1665
    %v1667 = vmul.f32 %v1663, %v89
    %v1668 = vmul.f32 %v1666, %v89
    %v1669 = vsub.f32 %v1659, %v1667
    %v1670 = vsub.f32 %v1660, %v1668
    %v1671 = vmul.f32 %v1669, %v1669
    %v1672 = vmul.f32 %v1670, %v1670
    %v1673 = vsel %vm76, %v1671, 0.0
    %1674 = vadd.xlane.f32.xlu0 %v1673
    %v1675 = vpop.xlane.xlu0 %1674
    %v1676 = vsel %vm76, %v1672, 0.0
    %1677 = vadd.xlane.f32.xlu0 %v1676
    %v1678 = vpop.xlane.xlu0 %1677
    %v1679 = vmul.f32 %v1675, 0.032258064
    %v1680 = vmul.f32 %v1678, 0.032258064
    %v1681 = vadd.f32 %v1679, 1e-12
    %v1682 = vadd.f32 %v1680, 1e-12
    %v1683 = vrsqrt.pop %v1681
    %v1684 = vmul.f32 %v1683, %v1681
    %v1685 = vmul.f32 %v1684, %v1683
    %v1686 = vmul.f32 0.5, %v1685
    %v1687 = vsub.f32 1.5, %v1686
    %v1688 = vmul.f32 %v1683, %v1687
    %vm1689 = vweird.f32 %v1681
    %vm1690 = vweird.f32 %v1683
    %vm1691 = vmor %vm1689, %vm1690
    %v1692 = vsel %vm1691, %v1683, %v1688
    %v1693 = vrsqrt.pop %v1682
    %v1694 = vmul.f32 %v1693, %v1682
    %v1695 = vmul.f32 %v1694, %v1693
    %v1696 = vmul.f32 0.5, %v1695
    %v1697 = vsub.f32 1.5, %v1696
    %v1698 = vmul.f32 %v1693, %v1697
    %vm1699 = vweird.f32 %v1682
    %vm1700 = vweird.f32 %v1693
    %vm1701 = vmor %vm1699, %vm1700
    %v1702 = vsel %vm1701, %v1693, %v1698
    %v1703 = vperm.slane %v75, 6
    %v1704 = vmul.f32 %v1703, %v1669
    %v1705 = vmul.f32 %v1703, %v1670
    %v1706 = vmul.f32 %v1704, %v1692
    %v1707 = vmul.f32 %v1705, %v1702
    %v1708 = vperm.slane %v75, 7
    %v1709 = vadd.f32 %v1706, %v1708
    %v1710 = vadd.f32 %v1707, %v1708
    %v1711 = vpack.c.bf16 %v1710, %v1709
    %v1712 = vld [vmem:[#allocation5] sm:$0xf]
    %v1713 = vld [vmem:[#allocation5 + $0x4] sm:$0xf]
    %v1714 = vld [vmem:[#allocation5 + $0x8] sm:$0xf]
    %v1715 = vld [vmem:[#allocation5 + $0xc] sm:$0xf]
    %v1716 = vperm.slane %v75, 2
    %v1721 = vunpack.c.l.b16 %v1712
    %v1722 = vunpack.c.l.b16 %v1713
    %v1723 = vunpack.c.l.b16 %v1714
    %v1724 = vunpack.c.l.b16 %v1715
    %v1725 = vpack.c.b16 %v1722, %v1721
    %v1726 = vpack.c.b16 %v1724, %v1723
    %v1730 = vsel %vm76, %v1711, 0
    %1732 = vmatpush.bf16.msra.mxu0 0
    %1733 = vmatpush.bf16.msra.mxu0 0
    %1734 = vmatpush.bf16.msra.mxu0 0
    %1735 = vmatpush.bf16.msra.mxu0 0
    %1736 = vmatpush.bf16.msra.mxu0 0
    %1737 = vmatpush.bf16.msra.mxu0 0
    %1738 = vmatpush.bf16.msra.mxu0 %v1726
    %1739 = vmatpush.bf16.msra.mxu0 %v1725
    %1740 = vmatmul.bf16.gmra.mxu0 %v1730
    %v1741 = vpop.f32.mrf.mxu0
    %v1742 = vadd.f32 %v1716, %v1741
    %v1743 = vpop.f32.mrf.mxu0
    %v1744 = vadd.f32 %v1716, %v1743
    %1745 = vdwg.mxu0
    %v1746 = vmax.f32 %v1742, 0.0
    %v1747 = vmax.f32 %v1744, 0.0
    %v1748 = vpack.c.bf16 %v1747, %v1746
    %v1749 = vld [vmem:[%s5] sm:$0xf]
    %v1750 = vld [vmem:[%s5 + $0x4] sm:$0xf]
    %v1751 = vld [vmem:[%s5 + $0x8] sm:$0xf]
    %v1752 = vld [vmem:[%s5 + $0xc] sm:$0xf]
    %v1753 = vld [vmem:[%s5 + $0x10] sm:$0xf]
    %v1754 = vld [vmem:[%s5 + $0x14] sm:$0xf]
    %v1755 = vld [vmem:[%s5 + $0x18] sm:$0xf]
    %v1756 = vld [vmem:[%s5 + $0x1c] sm:$0xf]
    %v1757 = vperm.slane %v75, 3
    %v1766 = vunpack.c.l.b16 %v1749
    %v1767 = vunpack.c.l.b16 %v1750
    %v1768 = vunpack.c.l.b16 %v1751
    %v1769 = vunpack.c.l.b16 %v1752
    %v1770 = vunpack.c.l.b16 %v1753
    %v1771 = vunpack.c.l.b16 %v1754
    %v1772 = vunpack.c.l.b16 %v1755
    %v1773 = vunpack.c.l.b16 %v1756
    %v1774 = vpack.c.b16 %v1767, %v1766
    %v1775 = vpack.c.b16 %v1769, %v1768
    %v1776 = vpack.c.b16 %v1771, %v1770
    %v1777 = vpack.c.b16 %v1773, %v1772
    %vm1782 = vcmask 523264
    %v1784 = vsel %vm1782, %v1748, 0
    %1786 = vmatpush.bf16.msra.mxu0 0
    %1787 = vmatpush.bf16.msra.mxu0 0
    %1788 = vmatpush.bf16.msra.mxu0 0
    %1789 = vmatpush.bf16.msra.mxu0 0
    %1790 = vmatpush.bf16.msra.mxu0 %v1777
    %1791 = vmatpush.bf16.msra.mxu0 %v1776
    %1792 = vmatpush.bf16.msra.mxu0 %v1775
    %1793 = vmatpush.bf16.msra.mxu0 %v1774
    %1794 = vmatmul.bf16.gmra.mxu0 %v1784
    %v1795 = vpop.f32.mrf.mxu0
    %v1796 = vadd.f32 %v1757, %v1795
    %v1797 = vpop.f32.mrf.mxu0
    %v1798 = vadd.f32 %v1757, %v1797
    %1799 = vdwg.mxu0
    %v1800 = vadd.f32 %v1659, %v1796
    %v1801 = vadd.f32 %v1660, %v1798
    %1802 = vst.msk [vmem:[#allocation8] sm:$0xff] %vm76, %v1800
    %1803 = vst.msk [vmem:[#allocation8 + $0x8] sm:$0xff] %vm76, %v1801
    // Predicated region
    $region42: #{tpu_custom_call.1} parent=1 // pred_check
      _
    $region43: #{tpu_custom_call.1} parent=1 // pred_check_branch
      %1805 = sbr.rel (0) target = $region45
    $region44: #{tpu_custom_call.1} parent=1 // pred_region
      %1807 = vsyncadd [#allocation4], 0
      %s1808 = sshll.u32 [#allocation8], 4
      %s1809 = int_to_ptr.vmem [resolvable:$true] %s1808
      %s1810 = sshll.u32 %s7, 4
      %s1811 = int_to_ptr.hbm [resolvable:$true] %s1810
      %1816 = dma.vmem_to_hbm [thread:$0]  %s1809, 256, %s1811, [#allocation4], 128, 128, 8
    $region45: #{tpu_custom_call.1} parent=1 // pred_fallthru
      _
    // Predicated region
    $region46: #{tpu_custom_call.1} parent=1 // pred_check
      _
    $region47: #{tpu_custom_call.1} parent=1 // pred_check_branch
      %1818 = sbr.rel (0) target = $region49
    $region48: #{tpu_custom_call.1} parent=1 // pred_region
      %1820 = dma.done [#allocation4], 256
    $region49: #{tpu_custom_call.1} parent=1 // pred_fallthru
      _
    %1821 = vsyncpa [#allocation3], 1
    %1822 = vsyncpa [#allocation6], 1
    %1823 = vsyncpa [#allocation4], 1

</llo_original>
